<compile_context>
chip_gen: v7x
topology: tpu7x:2x2x1
jax: 0.10.0
libtpu: 0.0.40
codegen_flags: <defaults>
</compile_context>

<pallas_src>
import math
import functools

import jax
import jax.numpy as jnp
from jax import lax
from jax.experimental import pallas as pl
from jax.experimental.pallas import tpu as pltpu


# ----------------------------------------------------------------------------
# helpers
# ----------------------------------------------------------------------------
def _tile(dim, pref):
    """Pick a tile size: use `pref` when it evenly divides, else the full dim
    (full-dim blocks always satisfy the (8,128) rule)."""
    if dim <= pref or dim % pref != 0:
        return dim
    return pref


# ----------------------------------------------------------------------------
# Tiled, pipelined matmul kernel (optionally with fused residual add).
# ----------------------------------------------------------------------------
def _matmul_kernel(x_ref, w_ref, o_ref, acc_ref):
    @pl.when(pl.program_id(2) == 0)
    def _init():
        acc_ref[...] = jnp.zeros_like(acc_ref)

    acc_ref[...] += jnp.dot(
        x_ref[...], w_ref[...], preferred_element_type=jnp.float32
    )

    @pl.when(pl.program_id(2) == pl.num_programs(2) - 1)
    def _fin():
        o_ref[...] = acc_ref[...].astype(o_ref.dtype)


def _matmul_residual_kernel(x_ref, w_ref, r_ref, o_ref, acc_ref):
    @pl.when(pl.program_id(2) == 0)
    def _init():
        acc_ref[...] = jnp.zeros_like(acc_ref)

    acc_ref[...] += jnp.dot(
        x_ref[...], w_ref[...], preferred_element_type=jnp.float32
    )

    @pl.when(pl.program_id(2) == pl.num_programs(2) - 1)
    def _fin():
        o_ref[...] = (acc_ref[...] + r_ref[...].astype(jnp.float32)).astype(
            o_ref.dtype
        )


def pallas_matmul(x, w, residual=None, *, tm_pref=256, tn_pref=256, tk_pref=512):
    """out = x @ w (+ residual).  x: (M, K), w: (K, N), residual: (M, N)."""
    M, K = x.shape
    K2, N = w.shape
    assert K == K2
    tm, tn, tk = _tile(M, tm_pref), _tile(N, tn_pref), _tile(K, tk_pref)
    grid = (M // tm, N // tn, K // tk)

    x_spec = pl.BlockSpec((tm, tk), lambda i, j, k: (i, k))
    w_spec = pl.BlockSpec((tk, tn), lambda i, j, k: (k, j))
    o_spec = pl.BlockSpec((tm, tn), lambda i, j, k: (i, j))
    scratch = [pltpu.VMEM((tm, tn), jnp.float32)]
    cparams = pltpu.CompilerParams(
        dimension_semantics=("parallel", "parallel", "arbitrary")
    )

    if residual is None:
        return pl.pallas_call(
            _matmul_kernel,
            out_shape=jax.ShapeDtypeStruct((M, N), x.dtype),
            grid=grid,
            in_specs=[x_spec, w_spec],
            out_specs=o_spec,
            scratch_shapes=scratch,
            compiler_params=cparams,
        )(x, w)
    else:
        r_spec = pl.BlockSpec((tm, tn), lambda i, j, k: (i, j))
        return pl.pallas_call(
            _matmul_residual_kernel,
            out_shape=jax.ShapeDtypeStruct((M, N), x.dtype),
            grid=grid,
            in_specs=[x_spec, w_spec, r_spec],
            out_specs=o_spec,
            scratch_shapes=scratch,
            compiler_params=cparams,
        )(x, w, residual)


# ----------------------------------------------------------------------------
# LayerNorm kernel (no bias), F.layer_norm semantics, eps=1e-5.
# ----------------------------------------------------------------------------
def _ln_kernel(x_ref, w_ref, o_ref, *, eps):
    x = x_ref[...].astype(jnp.float32)
    mu = jnp.mean(x, axis=-1, keepdims=True)
    xc = x - mu
    var = jnp.mean(xc * xc, axis=-1, keepdims=True)
    y = xc * lax.rsqrt(var + eps)
    o_ref[...] = (y * w_ref[...].astype(jnp.float32)).astype(o_ref.dtype)


def pallas_layernorm(x2d, weight, eps=1e-5):
    M, C = x2d.shape
    tm = _tile(M, 256)
    w2d = weight.reshape(1, C)
    return pl.pallas_call(
        functools.partial(_ln_kernel, eps=eps),
        out_shape=jax.ShapeDtypeStruct((M, C), x2d.dtype),
        grid=(M // tm,),
        in_specs=[
            pl.BlockSpec((tm, C), lambda i: (i, 0)),
            pl.BlockSpec((1, C), lambda i: (0, 0)),
        ],
        out_specs=pl.BlockSpec((tm, C), lambda i: (i, 0)),
        compiler_params=pltpu.CompilerParams(dimension_semantics=("parallel",)),
    )(x2d, w2d)


# ----------------------------------------------------------------------------
# Attention kernel: one batch element per grid step, all heads inside,
# lane-dense (B, T, n_head*head_dim) layout for q/k/v/o.
# ----------------------------------------------------------------------------
def _attn_kernel(q_ref, k_ref, v_ref, o_ref, *, n_head, head_dim, scale,
                 is_causal):
    q = q_ref[0]            # (T, H*Dh), native dtype (MXU-friendly)
    k = k_ref[0]
    v = v_ref[0]
    T = q.shape[0]

    if is_causal:
        row = lax.broadcasted_iota(jnp.int32, (T, T), 0)
        col = lax.broadcasted_iota(jnp.int32, (T, T), 1)
        causal = col <= row

    neg_big = jnp.float32(-1e30)   # finite sentinel: NaN-safe vs -inf
    outs = []
    for h in range(n_head):
        lo = h * head_dim
        qh = q[:, lo:lo + head_dim] * jnp.asarray(scale, q.dtype)  # fold scale
        kh = k[:, lo:lo + head_dim]
        vh = v[:, lo:lo + head_dim]

        # QK^T via dot_general contracting last axes (no k.T materialization).
        s = lax.dot_general(
            qh, kh, (((1,), (1,)), ((), ())),
            preferred_element_type=jnp.float32,
        )                                                 # (T, T) f32
        if is_causal:
            s = jnp.where(causal, s, neg_big)

        m = jnp.max(s, axis=-1, keepdims=True)
        p = jnp.exp(s - m)
        denom = jnp.sum(p, axis=-1, keepdims=True)
        o = jnp.dot(p.astype(vh.dtype), vh, preferred_element_type=jnp.float32)
        o = o * pl.reciprocal(denom, approx=True)         # EUP, off VALU path
        outs.append(o)

    # Single lane-dense store of all heads.
    o_ref[0] = jnp.concatenate(outs, axis=-1).astype(o_ref.dtype)


def pallas_attention(q, k, v, n_head, is_causal):
    B, T, L = q.shape
    head_dim = L // n_head
    scale = 1.0 / math.sqrt(head_dim)
    spec = pl.BlockSpec((1, T, L), lambda b: (b, 0, 0))
    return pl.pallas_call(
        functools.partial(
            _attn_kernel, n_head=n_head, head_dim=head_dim,
            scale=scale, is_causal=is_causal,
        ),
        out_shape=jax.ShapeDtypeStruct((B, T, L), q.dtype),
        grid=(B,),
        in_specs=[spec, spec, spec],
        out_specs=spec,
        compiler_params=pltpu.CompilerParams(dimension_semantics=("parallel",)),
    )(q, k, v)


# ----------------------------------------------------------------------------
# RoPE glue (rotary_embedding_torch semantics): rotate the first rope_dim
# features of each head, interleaved pairs, theta=10000.  Applied on the
# (B, T, H, Dh) view -- no head-major transpose needed.
# ----------------------------------------------------------------------------
def rope_tables(T, rope_dim, theta=10000.0):
    inv_freq = 1.0 / (
        theta ** (jnp.arange(0, rope_dim, 2, dtype=jnp.float32) / rope_dim)
    )
    t = jnp.arange(T, dtype=jnp.float32)
    freqs = jnp.repeat(t[:, None] * inv_freq[None, :], 2, axis=-1)  # (T, rd)
    return jnp.cos(freqs), jnp.sin(freqs)


def apply_rope(x, cos, sin):
    # x: (B, T, H, Dh); cos/sin: (T, rope_dim)
    rope_dim = cos.shape[-1]
    x_rot = x[..., :rope_dim]
    x_pass = x[..., rope_dim:]
    x1 = x_rot[..., 0::2]
    x2 = x_rot[..., 1::2]
    rot_half = jnp.stack((-x2, x1), axis=-1).reshape(x_rot.shape)
    c = cos[None, :, None, :]
    s = sin[None, :, None, :]
    out_rot = (x_rot * c + rot_half * s).astype(x.dtype)
    return jnp.concatenate([out_rot, x_pass], axis=-1)


# ----------------------------------------------------------------------------
# Full GPT forward (matches GPT.forward: embedding -> blocks -> final LN).
# ----------------------------------------------------------------------------
def gpt_forward(seq, params, cfg):
    B, T = seq.shape
    C = cfg["n_embd"]
    L = cfg["latent_dim"]
    H = cfg["n_head"]
    Dh = L // H

    x = jnp.take(params["emb"], seq, axis=0)          # (B, T, C) embedding
    cos, sin = rope_tables(T, cfg["rope_dim"])

    for blk in params["blocks"]:
        x2 = x.reshape(B * T, C)

        # --- attention sub-block: x = x + c_proj(attn(rope(qkv(ln1(x))))) ---
        h = pallas_layernorm(x2, blk["ln1_w"])
        qkv = pallas_matmul(h, blk["w_attn"]).reshape(B, T, 3 * L)
        q, k, v = jnp.split(qkv, 3, axis=-1)           # lane-dense (B,T,L)
        q = apply_rope(q.reshape(B, T, H, Dh), cos, sin).reshape(B, T, L)
        k = apply_rope(k.reshape(B, T, H, Dh), cos, sin).reshape(B, T, L)
        y = pallas_attention(q, k, v, H, cfg["is_causal"])     # (B, T, L)
        x2 = pallas_matmul(y.reshape(B * T, L), blk["w_proj"], residual=x2)

        # --- MLP sub-block: x = x + c_proj(gelu(c_fc(ln2(x)))) ---
        h2 = pallas_layernorm(x2, blk["ln2_w"])
        u = pallas_matmul(h2, blk["w_fc"])
        u = jax.nn.gelu(u, approximate=False)          # exact erf GELU
        x2 = pallas_matmul(u, blk["w_fc_proj"], residual=x2)

        x = x2.reshape(B, T, C)

    x = pallas_layernorm(x.reshape(B * T, C), params["ln_f_w"]).reshape(B, T, C)
    return x


# ----------------------------------------------------------------------------
# Parameter init (mirrors GPT._init_weights).  Linear weights are stored as
# (in, out) and applied as x @ W -- transpose when importing PyTorch weights.
# ----------------------------------------------------------------------------
def init_params(key, cfg):
    C = cfg["n_embd"]
    L = cfg["latent_dim"]
    Hd = cfg["mlp_hidden_dim"]
    V = cfg["vocab_size"]
    n_layer = cfg["n_layer"]
    proj_std = 0.02 / math.sqrt(2 * n_layer)

    keys = jax.random.split(key, 1 + 4 * n_layer)
    emb = jax.random.normal(keys[0], (V, C), dtype=jnp.float32)
    emb = emb.at[0].set(0.0)                            # padding_idx=0

    blocks = []
    for i in range(n_layer):
        ka, kp, kf, kfp = keys[1 + 4 * i: 1 + 4 * (i + 1)]
        blocks.append(dict(
            ln1_w=jnp.ones((C,), jnp.float32),
            w_attn=0.02 * jax.random.normal(ka, (C, 3 * L), jnp.float32),
            w_proj=proj_std * jax.random.normal(kp, (L, C), jnp.float32),
            ln2_w=jnp.ones((C,), jnp.float32),
            w_fc=0.02 * jax.random.normal(kf, (C, Hd), jnp.float32),
            w_fc_proj=proj_std * jax.random.normal(kfp, (Hd, C), jnp.float32),
        ))
    return dict(emb=emb, blocks=blocks, ln_f_w=jnp.ones((C,), jnp.float32))


if __name__ == "__main__":
    cfg = dict(
        vocab_size=32,
        n_embd=32,
        latent_dim=32,
        n_head=4,
        rope_dim=4,
        mlp_hidden_dim=64,
        n_layer=2,
        is_causal=True,
    )
    B, T = 2, 16

    key = jax.random.PRNGKey(0)
    k_params, k_seq = jax.random.split(key)
    params = init_params(k_params, cfg)
    seq = jax.random.randint(k_seq, (B, T), 0, cfg["vocab_size"], dtype=jnp.int32)

    fwd = jax.jit(lambda s: gpt_forward(s, params, cfg))
    y = fwd(seq)
    jax.block_until_ready(y)

    assert y.shape == (B, T, cfg["n_embd"])
    assert bool(jnp.all(jnp.isfinite(y)))
    print("KERNEL_OK")
</pallas_src>

<mosaic_0001>
module attributes {stable_mosaic.version = 11 : i64} {
  func.func @_ln_kernel(%arg0: i32, %arg1: memref<32x32xf32, #tpu.memory_space<vmem>>, %arg2: memref<1x32xf32, #tpu.memory_space<vmem>>, %arg3: memref<32x32xf32, #tpu.memory_space<vmem>>) attributes {dimension_semantics = [#tpu.dimension_semantics<parallel>], iteration_bounds = array<i64: 1>, scalar_prefetch = 0 : i64, scratch_operands = 0 : i64, tpu.core_type = #tpu.core_type<tc>, window_params = [{transform_indices = @transform_0, window_bounds = array<i64: 32, 32>}, {pipeline_mode = #tpu.pipeline_mode<synchronous>, transform_indices = @transform_1, window_bounds = array<i64: 1, 32>}, {transform_indices = @transform_2, window_bounds = array<i64: 32, 32>}]} {
    %c0 = arith.constant 0 : index
    %c0_0 = arith.constant 0 : index
    %0 = vector.load %arg1[%c0, %c0_0] : memref<32x32xf32, #tpu.memory_space<vmem>>, vector<32x32xf32>
    %cst = arith.constant dense<0.000000e+00> : vector<32xf32>
    %1 = vector.multi_reduction <add>, %0, %cst [1] : vector<32x32xf32> to vector<32xf32>
    %2 = vector.shape_cast %1 : vector<32xf32> to vector<32x1xf32>
    %cst_1 = arith.constant 3.200000e+01 : f32
    %3 = vector.broadcast %cst_1 : f32 to vector<32x1xf32>
    %4 = arith.divf %2, %3 : vector<32x1xf32>
    %5 = vector.broadcast %4 : vector<32x1xf32> to vector<32x32xf32>
    %6 = arith.subf %0, %5 : vector<32x32xf32>
    %7 = arith.mulf %6, %6 : vector<32x32xf32>
    %cst_2 = arith.constant dense<0.000000e+00> : vector<32xf32>
    %8 = vector.multi_reduction <add>, %7, %cst_2 [1] : vector<32x32xf32> to vector<32xf32>
    %9 = vector.shape_cast %8 : vector<32xf32> to vector<32x1xf32>
    %cst_3 = arith.constant 3.200000e+01 : f32
    %10 = vector.broadcast %cst_3 : f32 to vector<32x1xf32>
    %11 = arith.divf %9, %10 : vector<32x1xf32>
    %cst_4 = arith.constant 9.99999974E-6 : f32
    %12 = vector.broadcast %cst_4 : f32 to vector<32x1xf32>
    %13 = arith.addf %11, %12 : vector<32x1xf32>
    %14 = math.rsqrt %13 : vector<32x1xf32>
    %15 = vector.broadcast %14 : vector<32x1xf32> to vector<32x32xf32>
    %16 = arith.mulf %6, %15 : vector<32x32xf32>
    %c0_5 = arith.constant 0 : index
    %c0_6 = arith.constant 0 : index
    %17 = vector.load %arg2[%c0_5, %c0_6] : memref<1x32xf32, #tpu.memory_space<vmem>>, vector<1x32xf32>
    %18 = vector.broadcast %17 : vector<1x32xf32> to vector<32x32xf32>
    %19 = arith.mulf %16, %18 : vector<32x32xf32>
    %c0_7 = arith.constant 0 : index
    %c0_8 = arith.constant 0 : index
    %20 = vector.load %arg3[%c0_7, %c0_8] : memref<32x32xf32, #tpu.memory_space<vmem>>, vector<32x32xf32>
    tpu.vector_store %arg3[%c0_7, %c0_8], %19 {strides = array<i32>} : memref<32x32xf32, #tpu.memory_space<vmem>>, vector<32x32xf32>,
    return
  }
  func.func @transform_0(%arg0: i32) -> (i32, i32) {
    %c0_i32 = arith.constant 0 : i32
    %c0_i32_0 = arith.constant 0 : i32
    return %arg0, %c0_i32 : i32, i32
  }
  func.func @transform_1(%arg0: i32) -> (i32, i32) {
    %c0_i32 = arith.constant 0 : i32
    %c0_i32_0 = arith.constant 0 : i32
    %c0_i32_1 = arith.constant 0 : i32
    return %c0_i32, %c0_i32_0 : i32, i32
  }
  func.func @transform_2(%arg0: i32) -> (i32, i32) {
    %c0_i32 = arith.constant 0 : i32
    %c0_i32_0 = arith.constant 0 : i32
    return %arg0, %c0_i32 : i32, i32
  }
}

module attributes {stable_mosaic.version = 11 : i64} {
  func.func @_matmul_kernel(%arg0: i32, %arg1: i32, %arg2: i32, %arg3: memref<32x32xf32, #tpu.memory_space<vmem>>, %arg4: memref<32x96xf32, #tpu.memory_space<vmem>>, %arg5: memref<32x96xf32, #tpu.memory_space<vmem>>, %arg6: memref<32x96xf32, #tpu.memory_space<vmem>>) attributes {dimension_semantics = [#tpu.dimension_semantics<parallel>, #tpu.dimension_semantics<parallel>, #tpu.dimension_semantics<arbitrary>], iteration_bounds = array<i64: 1, 1, 1>, scalar_prefetch = 0 : i64, scratch_operands = 1 : i64, tpu.core_type = #tpu.core_type<tc>, window_params = [{transform_indices = @transform_0, window_bounds = array<i64: 32, 32>}, {transform_indices = @transform_1, window_bounds = array<i64: 32, 96>}, {transform_indices = @transform_2, window_bounds = array<i64: 32, 96>}]} {
    %c0_i32 = arith.constant 0 : i32
    %0 = arith.cmpi eq, %arg2, %c0_i32 : i32
    %1 = arith.extui %0 : i1 to i32
    %c0_i32_0 = arith.constant 0 : i32
    %2 = arith.cmpi ne, %1, %c0_i32_0 : i32
    scf.if %2 {
      %cst_10 = arith.constant 0.000000e+00 : f32
      %12 = vector.broadcast %cst_10 : f32 to vector<32x96xf32>
      %c0_11 = arith.constant 0 : index
      %c0_12 = arith.constant 0 : index
      %13 = vector.load %arg6[%c0_11, %c0_12] : memref<32x96xf32, #tpu.memory_space<vmem>>, vector<32x96xf32>
      tpu.vector_store %arg6[%c0_11, %c0_12], %12 {strides = array<i32>} : memref<32x96xf32, #tpu.memory_space<vmem>>, vector<32x96xf32>,
    } else {
    }
    %c0 = arith.constant 0 : index
    %c0_1 = arith.constant 0 : index
    %3 = vector.load %arg6[%c0, %c0_1] : memref<32x96xf32, #tpu.memory_space<vmem>>, vector<32x96xf32>
    %c0_2 = arith.constant 0 : index
    %c0_3 = arith.constant 0 : index
    %4 = vector.load %arg3[%c0_2, %c0_3] : memref<32x32xf32, #tpu.memory_space<vmem>>, vector<32x32xf32>
    %c0_4 = arith.constant 0 : index
    %c0_5 = arith.constant 0 : index
    %5 = vector.load %arg4[%c0_4, %c0_5] : memref<32x96xf32, #tpu.memory_space<vmem>>, vector<32x96xf32>
    %cst = arith.constant dense<0.000000e+00> : vector<32x96xf32>
    %6 = tpu.matmul %4, %5, %cst {dimension_numbers = #tpu.dot_dimension_numbers<[1], [0], [0], [1], [0, 0, 1, 1], [], []>} : vector<32x32xf32>, vector<32x96xf32>, vector<32x96xf32> -> vector<32x96xf32>
    %7 = arith.addf %3, %6 : vector<32x96xf32>
    %c0_6 = arith.constant 0 : index
    %c0_7 = arith.constant 0 : index
    %8 = vector.load %arg6[%c0_6, %c0_7] : memref<32x96xf32, #tpu.memory_space<vmem>>, vector<32x96xf32>
    tpu.vector_store %arg6[%c0_6, %c0_7], %7 {strides = array<i32>} : memref<32x96xf32, #tpu.memory_space<vmem>>, vector<32x96xf32>,
    %c0_i32_8 = arith.constant 0 : i32
    %9 = arith.cmpi eq, %arg2, %c0_i32_8 : i32
    %10 = arith.extui %9 : i1 to i32
    %c0_i32_9 = arith.constant 0 : i32
    %11 = arith.cmpi ne, %10, %c0_i32_9 : i32
    scf.if %11 {
      %c0_10 = arith.constant 0 : index
      %c0_11 = arith.constant 0 : index
      %12 = vector.load %arg6[%c0_10, %c0_11] : memref<32x96xf32, #tpu.memory_space<vmem>>, vector<32x96xf32>
      %c0_12 = arith.constant 0 : index
      %c0_13 = arith.constant 0 : index
      %13 = vector.load %arg5[%c0_12, %c0_13] : memref<32x96xf32, #tpu.memory_space<vmem>>, vector<32x96xf32>
      tpu.vector_store %arg5[%c0_12, %c0_13], %12 {strides = array<i32>} : memref<32x96xf32, #tpu.memory_space<vmem>>, vector<32x96xf32>,
    } else {
    }
    return
  }
  func.func @transform_0(%arg0: i32, %arg1: i32, %arg2: i32) -> (i32, i32) {
    %c0_i32 = arith.constant 0 : i32
    return %arg0, %arg2 : i32, i32
  }
  func.func @transform_1(%arg0: i32, %arg1: i32, %arg2: i32) -> (i32, i32) {
    %c0_i32 = arith.constant 0 : i32
    return %arg2, %arg1 : i32, i32
  }
  func.func @transform_2(%arg0: i32, %arg1: i32, %arg2: i32) -> (i32, i32) {
    %c0_i32 = arith.constant 0 : i32
    return %arg0, %arg1 : i32, i32
  }
}

module attributes {stable_mosaic.version = 11 : i64} {
  func.func @_attn_kernel(%arg0: i32, %arg1: memref<1x16x32xf32, #tpu.memory_space<vmem>>, %arg2: memref<1x16x32xf32, #tpu.memory_space<vmem>>, %arg3: memref<1x16x32xf32, #tpu.memory_space<vmem>>, %arg4: memref<1x16x32xf32, #tpu.memory_space<vmem>>) attributes {dimension_semantics = [#tpu.dimension_semantics<parallel>], iteration_bounds = array<i64: 2>, scalar_prefetch = 0 : i64, scratch_operands = 0 : i64, tpu.core_type = #tpu.core_type<tc>, window_params = [{transform_indices = @transform_0, window_bounds = array<i64: 1, 16, 32>}, {transform_indices = @transform_1, window_bounds = array<i64: 1, 16, 32>}, {transform_indices = @transform_2, window_bounds = array<i64: 1, 16, 32>}, {transform_indices = @transform_3, window_bounds = array<i64: 1, 16, 32>}]} {
    %c0 = arith.constant 0 : index
    %c0_0 = arith.constant 0 : index
    %c0_1 = arith.constant 0 : index
    %0 = vector.load %arg1[%c0, %c0_0, %c0_1] : memref<1x16x32xf32, #tpu.memory_space<vmem>>, vector<1x16x32xf32>
    %1 = vector.shape_cast %0 : vector<1x16x32xf32> to vector<16x32xf32>
    %c0_2 = arith.constant 0 : index
    %c0_3 = arith.constant 0 : index
    %c0_4 = arith.constant 0 : index
    %2 = vector.load %arg2[%c0_2, %c0_3, %c0_4] : memref<1x16x32xf32, #tpu.memory_space<vmem>>, vector<1x16x32xf32>
    %3 = vector.shape_cast %2 : vector<1x16x32xf32> to vector<16x32xf32>
    %c0_5 = arith.constant 0 : index
    %c0_6 = arith.constant 0 : index
    %c0_7 = arith.constant 0 : index
    %4 = vector.load %arg3[%c0_5, %c0_6, %c0_7] : memref<1x16x32xf32, #tpu.memory_space<vmem>>, vector<1x16x32xf32>
    %5 = vector.shape_cast %4 : vector<1x16x32xf32> to vector<16x32xf32>
    %6 = tpu.iota {dimensions = array<i32: 0>} : vector<16x16xi32>
    %7 = tpu.iota {dimensions = array<i32: 1>} : vector<16x16xi32>
    %8 = arith.cmpi sle, %7, %6 : vector<16x16xi32>
    %9 = vector.extract_strided_slice %1 {offsets = [0, 0], sizes = [16, 8], strides = [1, 1]} : vector<16x32xf32> to vector<16x8xf32>
    %cst = arith.constant 0.353553385 : f32
    %10 = vector.broadcast %cst : f32 to vector<16x8xf32>
    %11 = arith.mulf %9, %10 : vector<16x8xf32>
    %12 = vector.extract_strided_slice %3 {offsets = [0, 0], sizes = [16, 8], strides = [1, 1]} : vector<16x32xf32> to vector<16x8xf32>
    %13 = vector.extract_strided_slice %5 {offsets = [0, 0], sizes = [16, 8], strides = [1, 1]} : vector<16x32xf32> to vector<16x8xf32>
    %cst_8 = arith.constant dense<0.000000e+00> : vector<16x16xf32>
    %14 = tpu.matmul %11, %12, %cst_8 {dimension_numbers = #tpu.dot_dimension_numbers<[1], [1], [0], [0], [0, 0, 1, 0], [], []>} : vector<16x8xf32>, vector<16x8xf32>, vector<16x16xf32> -> vector<16x16xf32>
    %cst_9 = arith.constant -1.000000e+30 : f32
    %15 = vector.broadcast %cst_9 : f32 to vector<16x16xf32>
    %16 = arith.select %8, %14, %15 : vector<16x16xi1>, vector<16x16xf32>
    %cst_10 = arith.constant dense<0xFF800000> : vector<16xf32>
    %17 = vector.multi_reduction <maximumf>, %16, %cst_10 [1] : vector<16x16xf32> to vector<16xf32>
    %18 = vector.shape_cast %17 : vector<16xf32> to vector<16x1xf32>
    %19 = vector.broadcast %18 : vector<16x1xf32> to vector<16x16xf32>
    %20 = arith.subf %16, %19 : vector<16x16xf32>
    %21 = math.exp %20 : vector<16x16xf32>
    %cst_11 = arith.constant dense<0.000000e+00> : vector<16xf32>
    %22 = vector.multi_reduction <add>, %21, %cst_11 [1] : vector<16x16xf32> to vector<16xf32>
    %23 = vector.shape_cast %22 : vector<16xf32> to vector<16x1xf32>
    %cst_12 = arith.constant dense<0.000000e+00> : vector<16x8xf32>
    %24 = tpu.matmul %21, %13, %cst_12 {dimension_numbers = #tpu.dot_dimension_numbers<[1], [0], [0], [1], [0, 0, 1, 1], [], []>} : vector<16x16xf32>, vector<16x8xf32>, vector<16x8xf32> -> vector<16x8xf32>
    %25 = tpu.reciprocal %23 {approx = true} : vector<16x1xf32> -> vector<16x1xf32>
    %26 = vector.broadcast %25 : vector<16x1xf32> to vector<16x8xf32>
    %27 = arith.mulf %24, %26 : vector<16x8xf32>
    %28 = vector.extract_strided_slice %1 {offsets = [0, 8], sizes = [16, 8], strides = [1, 1]} : vector<16x32xf32> to vector<16x8xf32>
    %cst_13 = arith.constant 0.353553385 : f32
    %29 = vector.broadcast %cst_13 : f32 to vector<16x8xf32>
    %30 = arith.mulf %28, %29 : vector<16x8xf32>
    %31 = vector.extract_strided_slice %3 {offsets = [0, 8], sizes = [16, 8], strides = [1, 1]} : vector<16x32xf32> to vector<16x8xf32>
    %32 = vector.extract_strided_slice %5 {offsets = [0, 8], sizes = [16, 8], strides = [1, 1]} : vector<16x32xf32> to vector<16x8xf32>
    %cst_14 = arith.constant dense<0.000000e+00> : vector<16x16xf32>
    %33 = tpu.matmul %30, %31, %cst_14 {dimension_numbers = #tpu.dot_dimension_numbers<[1], [1], [0], [0], [0, 0, 1, 0], [], []>} : vector<16x8xf32>, vector<16x8xf32>, vector<16x16xf32> -> vector<16x16xf32>
    %cst_15 = arith.constant -1.000000e+30 : f32
    %34 = vector.broadcast %cst_15 : f32 to vector<16x16xf32>
    %35 = arith.select %8, %33, %34 : vector<16x16xi1>, vector<16x16xf32>
    %cst_16 = arith.constant dense<0xFF800000> : vector<16xf32>
    %36 = vector.multi_reduction <maximumf>, %35, %cst_16 [1] : vector<16x16xf32> to vector<16xf32>
    %37 = vector.shape_cast %36 : vector<16xf32> to vector<16x1xf32>
    %38 = vector.broadcast %37 : vector<16x1xf32> to vector<16x16xf32>
    %39 = arith.subf %35, %38 : vector<16x16xf32>
    %40 = math.exp %39 : vector<16x16xf32>
    %cst_17 = arith.constant dense<0.000000e+00> : vector<16xf32>
    %41 = vector.multi_reduction <add>, %40, %cst_17 [1] : vector<16x16xf32> to vector<16xf32>
    %42 = vector.shape_cast %41 : vector<16xf32> to vector<16x1xf32>
    %cst_18 = arith.constant dense<0.000000e+00> : vector<16x8xf32>
    %43 = tpu.matmul %40, %32, %cst_18 {dimension_numbers = #tpu.dot_dimension_numbers<[1], [0], [0], [1], [0, 0, 1, 1], [], []>} : vector<16x16xf32>, vector<16x8xf32>, vector<16x8xf32> -> vector<16x8xf32>
    %44 = tpu.reciprocal %42 {approx = true} : vector<16x1xf32> -> vector<16x1xf32>
    %45 = vector.broadcast %44 : vector<16x1xf32> to vector<16x8xf32>
    %46 = arith.mulf %43, %45 : vector<16x8xf32>
    %47 = vector.extract_strided_slice %1 {offsets = [0, 16], sizes = [16, 8], strides = [1, 1]} : vector<16x32xf32> to vector<16x8xf32>
    %cst_19 = arith.constant 0.353553385 : f32
    %48 = vector.broadcast %cst_19 : f32 to vector<16x8xf32>
    %49 = arith.mulf %47, %48 : vector<16x8xf32>
    %50 = vector.extract_strided_slice %3 {offsets = [0, 16], sizes = [16, 8], strides = [1, 1]} : vector<16x32xf32> to vector<16x8xf32>
    %51 = vector.extract_strided_slice %5 {offsets = [0, 16], sizes = [16, 8], strides = [1, 1]} : vector<16x32xf32> to vector<16x8xf32>
    %cst_20 = arith.constant dense<0.000000e+00> : vector<16x16xf32>
    %52 = tpu.matmul %49, %50, %cst_20 {dimension_numbers = #tpu.dot_dimension_numbers<[1], [1], [0], [0], [0, 0, 1, 0], [], []>} : vector<16x8xf32>, vector<16x8xf32>, vector<16x16xf32> -> vector<16x16xf32>
    %cst_21 = arith.constant -1.000000e+30 : f32
    %53 = vector.broadcast %cst_21 : f32 to vector<16x16xf32>
    %54 = arith.select %8, %52, %53 : vector<16x16xi1>, vector<16x16xf32>
    %cst_22 = arith.constant dense<0xFF800000> : vector<16xf32>
    %55 = vector.multi_reduction <maximumf>, %54, %cst_22 [1] : vector<16x16xf32> to vector<16xf32>
    %56 = vector.shape_cast %55 : vector<16xf32> to vector<16x1xf32>
    %57 = vector.broadcast %56 : vector<16x1xf32> to vector<16x16xf32>
    %58 = arith.subf %54, %57 : vector<16x16xf32>
    %59 = math.exp %58 : vector<16x16xf32>
    %cst_23 = arith.constant dense<0.000000e+00> : vector<16xf32>
    %60 = vector.multi_reduction <add>, %59, %cst_23 [1] : vector<16x16xf32> to vector<16xf32>
    %61 = vector.shape_cast %60 : vector<16xf32> to vector<16x1xf32>
    %cst_24 = arith.constant dense<0.000000e+00> : vector<16x8xf32>
    %62 = tpu.matmul %59, %51, %cst_24 {dimension_numbers = #tpu.dot_dimension_numbers<[1], [0], [0], [1], [0, 0, 1, 1], [], []>} : vector<16x16xf32>, vector<16x8xf32>, vector<16x8xf32> -> vector<16x8xf32>
    %63 = tpu.reciprocal %61 {approx = true} : vector<16x1xf32> -> vector<16x1xf32>
    %64 = vector.broadcast %63 : vector<16x1xf32> to vector<16x8xf32>
    %65 = arith.mulf %62, %64 : vector<16x8xf32>
    %66 = vector.extract_strided_slice %1 {offsets = [0, 24], sizes = [16, 8], strides = [1, 1]} : vector<16x32xf32> to vector<16x8xf32>
    %cst_25 = arith.constant 0.353553385 : f32
    %67 = vector.broadcast %cst_25 : f32 to vector<16x8xf32>
    %68 = arith.mulf %66, %67 : vector<16x8xf32>
    %69 = vector.extract_strided_slice %3 {offsets = [0, 24], sizes = [16, 8], strides = [1, 1]} : vector<16x32xf32> to vector<16x8xf32>
    %70 = vector.extract_strided_slice %5 {offsets = [0, 24], sizes = [16, 8], strides = [1, 1]} : vector<16x32xf32> to vector<16x8xf32>
    %cst_26 = arith.constant dense<0.000000e+00> : vector<16x16xf32>
    %71 = tpu.matmul %68, %69, %cst_26 {dimension_numbers = #tpu.dot_dimension_numbers<[1], [1], [0], [0], [0, 0, 1, 0], [], []>} : vector<16x8xf32>, vector<16x8xf32>, vector<16x16xf32> -> vector<16x16xf32>
    %cst_27 = arith.constant -1.000000e+30 : f32
    %72 = vector.broadcast %cst_27 : f32 to vector<16x16xf32>
    %73 = arith.select %8, %71, %72 : vector<16x16xi1>, vector<16x16xf32>
    %cst_28 = arith.constant dense<0xFF800000> : vector<16xf32>
    %74 = vector.multi_reduction <maximumf>, %73, %cst_28 [1] : vector<16x16xf32> to vector<16xf32>
    %75 = vector.shape_cast %74 : vector<16xf32> to vector<16x1xf32>
    %76 = vector.broadcast %75 : vector<16x1xf32> to vector<16x16xf32>
    %77 = arith.subf %73, %76 : vector<16x16xf32>
    %78 = math.exp %77 : vector<16x16xf32>
    %cst_29 = arith.constant dense<0.000000e+00> : vector<16xf32>
    %79 = vector.multi_reduction <add>, %78, %cst_29 [1] : vector<16x16xf32> to vector<16xf32>
    %80 = vector.shape_cast %79 : vector<16xf32> to vector<16x1xf32>
    %cst_30 = arith.constant dense<0.000000e+00> : vector<16x8xf32>
    %81 = tpu.matmul %78, %70, %cst_30 {dimension_numbers = #tpu.dot_dimension_numbers<[1], [0], [0], [1], [0, 0, 1, 1], [], []>} : vector<16x16xf32>, vector<16x8xf32>, vector<16x8xf32> -> vector<16x8xf32>
    %82 = tpu.reciprocal %80 {approx = true} : vector<16x1xf32> -> vector<16x1xf32>
    %83 = vector.broadcast %82 : vector<16x1xf32> to vector<16x8xf32>
    %84 = arith.mulf %81, %83 : vector<16x8xf32>
    %85 = tpu.concatenate %27, %46, %65, %84 in 1 : vector<16x8xf32>, vector<16x8xf32>, vector<16x8xf32>, vector<16x8xf32> -> vector<16x32xf32>
    %c0_31 = arith.constant 0 : index
    %c0_32 = arith.constant 0 : index
    %c0_33 = arith.constant 0 : index
    %86 = vector.load %arg4[%c0_31, %c0_32, %c0_33] : memref<1x16x32xf32, #tpu.memory_space<vmem>>, vector<1x16x32xf32>
    %87 = vector.shape_cast %86 : vector<1x16x32xf32> to vector<16x32xf32>
    %88 = vector.shape_cast %85 : vector<16x32xf32> to vector<1x16x32xf32>
    tpu.vector_store %arg4[%c0_31, %c0_32, %c0_33], %88 {strides = array<i32>} : memref<1x16x32xf32, #tpu.memory_space<vmem>>, vector<1x16x32xf32>,
    return
  }
  func.func @transform_0(%arg0: i32) -> (i32, i32, i32) {
    %c0_i32 = arith.constant 0 : i32
    %c0_i32_0 = arith.constant 0 : i32
    %c0_i32_1 = arith.constant 0 : i32
    return %arg0, %c0_i32, %c0_i32_0 : i32, i32, i32
  }
  func.func @transform_1(%arg0: i32) -> (i32, i32, i32) {
    %c0_i32 = arith.constant 0 : i32
    %c0_i32_0 = arith.constant 0 : i32
    %c0_i32_1 = arith.constant 0 : i32
    return %arg0, %c0_i32, %c0_i32_0 : i32, i32, i32
  }
  func.func @transform_2(%arg0: i32) -> (i32, i32, i32) {
    %c0_i32 = arith.constant 0 : i32
    %c0_i32_0 = arith.constant 0 : i32
    %c0_i32_1 = arith.constant 0 : i32
    return %arg0, %c0_i32, %c0_i32_0 : i32, i32, i32
  }
  func.func @transform_3(%arg0: i32) -> (i32, i32, i32) {
    %c0_i32 = arith.constant 0 : i32
    %c0_i32_0 = arith.constant 0 : i32
    %c0_i32_1 = arith.constant 0 : i32
    return %arg0, %c0_i32, %c0_i32_0 : i32, i32, i32
  }
}

module attributes {stable_mosaic.version = 11 : i64} {
  func.func @_matmul_residual_kernel(%arg0: i32, %arg1: i32, %arg2: i32, %arg3: memref<32x32xf32, #tpu.memory_space<vmem>>, %arg4: memref<32x32xf32, #tpu.memory_space<vmem>>, %arg5: memref<32x32xf32, #tpu.memory_space<vmem>>, %arg6: memref<32x32xf32, #tpu.memory_space<vmem>>, %arg7: memref<32x32xf32, #tpu.memory_space<vmem>>) attributes {dimension_semantics = [#tpu.dimension_semantics<parallel>, #tpu.dimension_semantics<parallel>, #tpu.dimension_semantics<arbitrary>], iteration_bounds = array<i64: 1, 1, 1>, scalar_prefetch = 0 : i64, scratch_operands = 1 : i64, tpu.core_type = #tpu.core_type<tc>, window_params = [{transform_indices = @transform_0, window_bounds = array<i64: 32, 32>}, {transform_indices = @transform_1, window_bounds = array<i64: 32, 32>}, {transform_indices = @transform_2, window_bounds = array<i64: 32, 32>}, {transform_indices = @transform_3, window_bounds = array<i64: 32, 32>}]} {
    %c0_i32 = arith.constant 0 : i32
    %0 = arith.cmpi eq, %arg2, %c0_i32 : i32
    %1 = arith.extui %0 : i1 to i32
    %c0_i32_0 = arith.constant 0 : i32
    %2 = arith.cmpi ne, %1, %c0_i32_0 : i32
    scf.if %2 {
      %cst_10 = arith.constant 0.000000e+00 : f32
      %12 = vector.broadcast %cst_10 : f32 to vector<32x32xf32>
      %c0_11 = arith.constant 0 : index
      %c0_12 = arith.constant 0 : index
      %13 = vector.load %arg7[%c0_11, %c0_12] : memref<32x32xf32, #tpu.memory_space<vmem>>, vector<32x32xf32>
      tpu.vector_store %arg7[%c0_11, %c0_12], %12 {strides = array<i32>} : memref<32x32xf32, #tpu.memory_space<vmem>>, vector<32x32xf32>,
    } else {
    }
    %c0 = arith.constant 0 : index
    %c0_1 = arith.constant 0 : index
    %3 = vector.load %arg7[%c0, %c0_1] : memref<32x32xf32, #tpu.memory_space<vmem>>, vector<32x32xf32>
    %c0_2 = arith.constant 0 : index
    %c0_3 = arith.constant 0 : index
    %4 = vector.load %arg3[%c0_2, %c0_3] : memref<32x32xf32, #tpu.memory_space<vmem>>, vector<32x32xf32>
    %c0_4 = arith.constant 0 : index
    %c0_5 = arith.constant 0 : index
    %5 = vector.load %arg4[%c0_4, %c0_5] : memref<32x32xf32, #tpu.memory_space<vmem>>, vector<32x32xf32>
    %cst = arith.constant dense<0.000000e+00> : vector<32x32xf32>
    %6 = tpu.matmul %4, %5, %cst {dimension_numbers = #tpu.dot_dimension_numbers<[1], [0], [0], [1], [0, 0, 1, 1], [], []>} : vector<32x32xf32>, vector<32x32xf32>, vector<32x32xf32> -> vector<32x32xf32>
    %7 = arith.addf %3, %6 : vector<32x32xf32>
    %c0_6 = arith.constant 0 : index
    %c0_7 = arith.constant 0 : index
    %8 = vector.load %arg7[%c0_6, %c0_7] : memref<32x32xf32, #tpu.memory_space<vmem>>, vector<32x32xf32>
    tpu.vector_store %arg7[%c0_6, %c0_7], %7 {strides = array<i32>} : memref<32x32xf32, #tpu.memory_space<vmem>>, vector<32x32xf32>,
    %c0_i32_8 = arith.constant 0 : i32
    %9 = arith.cmpi eq, %arg2, %c0_i32_8 : i32
    %10 = arith.extui %9 : i1 to i32
    %c0_i32_9 = arith.constant 0 : i32
    %11 = arith.cmpi ne, %10, %c0_i32_9 : i32
    scf.if %11 {
      %c0_10 = arith.constant 0 : index
      %c0_11 = arith.constant 0 : index
      %12 = vector.load %arg7[%c0_10, %c0_11] : memref<32x32xf32, #tpu.memory_space<vmem>>, vector<32x32xf32>
      %c0_12 = arith.constant 0 : index
      %c0_13 = arith.constant 0 : index
      %13 = vector.load %arg5[%c0_12, %c0_13] : memref<32x32xf32, #tpu.memory_space<vmem>>, vector<32x32xf32>
      %14 = arith.addf %12, %13 : vector<32x32xf32>
      %c0_14 = arith.constant 0 : index
      %c0_15 = arith.constant 0 : index
      %15 = vector.load %arg6[%c0_14, %c0_15] : memref<32x32xf32, #tpu.memory_space<vmem>>, vector<32x32xf32>
      tpu.vector_store %arg6[%c0_14, %c0_15], %14 {strides = array<i32>} : memref<32x32xf32, #tpu.memory_space<vmem>>, vector<32x32xf32>,
    } else {
    }
    return
  }
  func.func @transform_0(%arg0: i32, %arg1: i32, %arg2: i32) -> (i32, i32) {
    %c0_i32 = arith.constant 0 : i32
    return %arg0, %arg2 : i32, i32
  }
  func.func @transform_1(%arg0: i32, %arg1: i32, %arg2: i32) -> (i32, i32) {
    %c0_i32 = arith.constant 0 : i32
    return %arg2, %arg1 : i32, i32
  }
  func.func @transform_2(%arg0: i32, %arg1: i32, %arg2: i32) -> (i32, i32) {
    %c0_i32 = arith.constant 0 : i32
    return %arg0, %arg1 : i32, i32
  }
  func.func @transform_3(%arg0: i32, %arg1: i32, %arg2: i32) -> (i32, i32) {
    %c0_i32 = arith.constant 0 : i32
    return %arg0, %arg1 : i32, i32
  }
}

module attributes {stable_mosaic.version = 11 : i64} {
  func.func @_matmul_kernel(%arg0: i32, %arg1: i32, %arg2: i32, %arg3: memref<32x32xf32, #tpu.memory_space<vmem>>, %arg4: memref<32x64xf32, #tpu.memory_space<vmem>>, %arg5: memref<32x64xf32, #tpu.memory_space<vmem>>, %arg6: memref<32x64xf32, #tpu.memory_space<vmem>>) attributes {dimension_semantics = [#tpu.dimension_semantics<parallel>, #tpu.dimension_semantics<parallel>, #tpu.dimension_semantics<arbitrary>], iteration_bounds = array<i64: 1, 1, 1>, scalar_prefetch = 0 : i64, scratch_operands = 1 : i64, tpu.core_type = #tpu.core_type<tc>, window_params = [{transform_indices = @transform_0, window_bounds = array<i64: 32, 32>}, {transform_indices = @transform_1, window_bounds = array<i64: 32, 64>}, {transform_indices = @transform_2, window_bounds = array<i64: 32, 64>}]} {
    %c0_i32 = arith.constant 0 : i32
    %0 = arith.cmpi eq, %arg2, %c0_i32 : i32
    %1 = arith.extui %0 : i1 to i32
    %c0_i32_0 = arith.constant 0 : i32
    %2 = arith.cmpi ne, %1, %c0_i32_0 : i32
    scf.if %2 {
      %cst_10 = arith.constant 0.000000e+00 : f32
      %12 = vector.broadcast %cst_10 : f32 to vector<32x64xf32>
      %c0_11 = arith.constant 0 : index
      %c0_12 = arith.constant 0 : index
      %13 = vector.load %arg6[%c0_11, %c0_12] : memref<32x64xf32, #tpu.memory_space<vmem>>, vector<32x64xf32>
      tpu.vector_store %arg6[%c0_11, %c0_12], %12 {strides = array<i32>} : memref<32x64xf32, #tpu.memory_space<vmem>>, vector<32x64xf32>,
    } else {
    }
    %c0 = arith.constant 0 : index
    %c0_1 = arith.constant 0 : index
    %3 = vector.load %arg6[%c0, %c0_1] : memref<32x64xf32, #tpu.memory_space<vmem>>, vector<32x64xf32>
    %c0_2 = arith.constant 0 : index
    %c0_3 = arith.constant 0 : index
    %4 = vector.load %arg3[%c0_2, %c0_3] : memref<32x32xf32, #tpu.memory_space<vmem>>, vector<32x32xf32>
    %c0_4 = arith.constant 0 : index
    %c0_5 = arith.constant 0 : index
    %5 = vector.load %arg4[%c0_4, %c0_5] : memref<32x64xf32, #tpu.memory_space<vmem>>, vector<32x64xf32>
    %cst = arith.constant dense<0.000000e+00> : vector<32x64xf32>
    %6 = tpu.matmul %4, %5, %cst {dimension_numbers = #tpu.dot_dimension_numbers<[1], [0], [0], [1], [0, 0, 1, 1], [], []>} : vector<32x32xf32>, vector<32x64xf32>, vector<32x64xf32> -> vector<32x64xf32>
    %7 = arith.addf %3, %6 : vector<32x64xf32>
    %c0_6 = arith.constant 0 : index
    %c0_7 = arith.constant 0 : index
    %8 = vector.load %arg6[%c0_6, %c0_7] : memref<32x64xf32, #tpu.memory_space<vmem>>, vector<32x64xf32>
    tpu.vector_store %arg6[%c0_6, %c0_7], %7 {strides = array<i32>} : memref<32x64xf32, #tpu.memory_space<vmem>>, vector<32x64xf32>,
    %c0_i32_8 = arith.constant 0 : i32
    %9 = arith.cmpi eq, %arg2, %c0_i32_8 : i32
    %10 = arith.extui %9 : i1 to i32
    %c0_i32_9 = arith.constant 0 : i32
    %11 = arith.cmpi ne, %10, %c0_i32_9 : i32
    scf.if %11 {
      %c0_10 = arith.constant 0 : index
      %c0_11 = arith.constant 0 : index
      %12 = vector.load %arg6[%c0_10, %c0_11] : memref<32x64xf32, #tpu.memory_space<vmem>>, vector<32x64xf32>
      %c0_12 = arith.constant 0 : index
      %c0_13 = arith.constant 0 : index
      %13 = vector.load %arg5[%c0_12, %c0_13] : memref<32x64xf32, #tpu.memory_space<vmem>>, vector<32x64xf32>
      tpu.vector_store %arg5[%c0_12, %c0_13], %12 {strides = array<i32>} : memref<32x64xf32, #tpu.memory_space<vmem>>, vector<32x64xf32>,
    } else {
    }
    return
  }
  func.func @transform_0(%arg0: i32, %arg1: i32, %arg2: i32) -> (i32, i32) {
    %c0_i32 = arith.constant 0 : i32
    return %arg0, %arg2 : i32, i32
  }
  func.func @transform_1(%arg0: i32, %arg1: i32, %arg2: i32) -> (i32, i32) {
    %c0_i32 = arith.constant 0 : i32
    return %arg2, %arg1 : i32, i32
  }
  func.func @transform_2(%arg0: i32, %arg1: i32, %arg2: i32) -> (i32, i32) {
    %c0_i32 = arith.constant 0 : i32
    return %arg0, %arg1 : i32, i32
  }
}

module attributes {stable_mosaic.version = 11 : i64} {
  func.func @_matmul_residual_kernel(%arg0: i32, %arg1: i32, %arg2: i32, %arg3: memref<32x64xf32, #tpu.memory_space<vmem>>, %arg4: memref<64x32xf32, #tpu.memory_space<vmem>>, %arg5: memref<32x32xf32, #tpu.memory_space<vmem>>, %arg6: memref<32x32xf32, #tpu.memory_space<vmem>>, %arg7: memref<32x32xf32, #tpu.memory_space<vmem>>) attributes {dimension_semantics = [#tpu.dimension_semantics<parallel>, #tpu.dimension_semantics<parallel>, #tpu.dimension_semantics<arbitrary>], iteration_bounds = array<i64: 1, 1, 1>, scalar_prefetch = 0 : i64, scratch_operands = 1 : i64, tpu.core_type = #tpu.core_type<tc>, window_params = [{transform_indices = @transform_0, window_bounds = array<i64: 32, 64>}, {transform_indices = @transform_1, window_bounds = array<i64: 64, 32>}, {transform_indices = @transform_2, window_bounds = array<i64: 32, 32>}, {transform_indices = @transform_3, window_bounds = array<i64: 32, 32>}]} {
    %c0_i32 = arith.constant 0 : i32
    %0 = arith.cmpi eq, %arg2, %c0_i32 : i32
    %1 = arith.extui %0 : i1 to i32
    %c0_i32_0 = arith.constant 0 : i32
    %2 = arith.cmpi ne, %1, %c0_i32_0 : i32
    scf.if %2 {
      %cst_10 = arith.constant 0.000000e+00 : f32
      %12 = vector.broadcast %cst_10 : f32 to vector<32x32xf32>
      %c0_11 = arith.constant 0 : index
      %c0_12 = arith.constant 0 : index
      %13 = vector.load %arg7[%c0_11, %c0_12] : memref<32x32xf32, #tpu.memory_space<vmem>>, vector<32x32xf32>
      tpu.vector_store %arg7[%c0_11, %c0_12], %12 {strides = array<i32>} : memref<32x32xf32, #tpu.memory_space<vmem>>, vector<32x32xf32>,
    } else {
    }
    %c0 = arith.constant 0 : index
    %c0_1 = arith.constant 0 : index
    %3 = vector.load %arg7[%c0, %c0_1] : memref<32x32xf32, #tpu.memory_space<vmem>>, vector<32x32xf32>
    %c0_2 = arith.constant 0 : index
    %c0_3 = arith.constant 0 : index
    %4 = vector.load %arg3[%c0_2, %c0_3] : memref<32x64xf32, #tpu.memory_space<vmem>>, vector<32x64xf32>
    %c0_4 = arith.constant 0 : index
    %c0_5 = arith.constant 0 : index
    %5 = vector.load %arg4[%c0_4, %c0_5] : memref<64x32xf32, #tpu.memory_space<vmem>>, vector<64x32xf32>
    %cst = arith.constant dense<0.000000e+00> : vector<32x32xf32>
    %6 = tpu.matmul %4, %5, %cst {dimension_numbers = #tpu.dot_dimension_numbers<[1], [0], [0], [1], [0, 0, 1, 1], [], []>} : vector<32x64xf32>, vector<64x32xf32>, vector<32x32xf32> -> vector<32x32xf32>
    %7 = arith.addf %3, %6 : vector<32x32xf32>
    %c0_6 = arith.constant 0 : index
    %c0_7 = arith.constant 0 : index
    %8 = vector.load %arg7[%c0_6, %c0_7] : memref<32x32xf32, #tpu.memory_space<vmem>>, vector<32x32xf32>
    tpu.vector_store %arg7[%c0_6, %c0_7], %7 {strides = array<i32>} : memref<32x32xf32, #tpu.memory_space<vmem>>, vector<32x32xf32>,
    %c0_i32_8 = arith.constant 0 : i32
    %9 = arith.cmpi eq, %arg2, %c0_i32_8 : i32
    %10 = arith.extui %9 : i1 to i32
    %c0_i32_9 = arith.constant 0 : i32
    %11 = arith.cmpi ne, %10, %c0_i32_9 : i32
    scf.if %11 {
      %c0_10 = arith.constant 0 : index
      %c0_11 = arith.constant 0 : index
      %12 = vector.load %arg7[%c0_10, %c0_11] : memref<32x32xf32, #tpu.memory_space<vmem>>, vector<32x32xf32>
      %c0_12 = arith.constant 0 : index
      %c0_13 = arith.constant 0 : index
      %13 = vector.load %arg5[%c0_12, %c0_13] : memref<32x32xf32, #tpu.memory_space<vmem>>, vector<32x32xf32>
      %14 = arith.addf %12, %13 : vector<32x32xf32>
      %c0_14 = arith.constant 0 : index
      %c0_15 = arith.constant 0 : index
      %15 = vector.load %arg6[%c0_14, %c0_15] : memref<32x32xf32, #tpu.memory_space<vmem>>, vector<32x32xf32>
      tpu.vector_store %arg6[%c0_14, %c0_15], %14 {strides = array<i32>} : memref<32x32xf32, #tpu.memory_space<vmem>>, vector<32x32xf32>,
    } else {
    }
    return
  }
  func.func @transform_0(%arg0: i32, %arg1: i32, %arg2: i32) -> (i32, i32) {
    %c0_i32 = arith.constant 0 : i32
    return %arg0, %arg2 : i32, i32
  }
  func.func @transform_1(%arg0: i32, %arg1: i32, %arg2: i32) -> (i32, i32) {
    %c0_i32 = arith.constant 0 : i32
    return %arg2, %arg1 : i32, i32
  }
  func.func @transform_2(%arg0: i32, %arg1: i32, %arg2: i32) -> (i32, i32) {
    %c0_i32 = arith.constant 0 : i32
    return %arg0, %arg1 : i32, i32
  }
  func.func @transform_3(%arg0: i32, %arg1: i32, %arg2: i32) -> (i32, i32) {
    %c0_i32 = arith.constant 0 : i32
    return %arg0, %arg1 : i32, i32
  }
}

module attributes {stable_mosaic.version = 11 : i64} {
  func.func @_ln_kernel(%arg0: i32, %arg1: memref<32x32xf32, #tpu.memory_space<vmem>>, %arg2: memref<1x32xf32, #tpu.memory_space<vmem>>, %arg3: memref<32x32xf32, #tpu.memory_space<vmem>>) attributes {dimension_semantics = [#tpu.dimension_semantics<parallel>], iteration_bounds = array<i64: 1>, scalar_prefetch = 0 : i64, scratch_operands = 0 : i64, tpu.core_type = #tpu.core_type<tc>, window_params = [{transform_indices = @transform_0, window_bounds = array<i64: 32, 32>}, {pipeline_mode = #tpu.pipeline_mode<synchronous>, transform_indices = @transform_1, window_bounds = array<i64: 1, 32>}, {transform_indices = @transform_2, window_bounds = array<i64: 32, 32>}]} {
    %c0 = arith.constant 0 : index
    %c0_0 = arith.constant 0 : index
    %0 = vector.load %arg1[%c0, %c0_0] : memref<32x32xf32, #tpu.memory_space<vmem>>, vector<32x32xf32>
    %cst = arith.constant dense<0.000000e+00> : vector<32xf32>
    %1 = vector.multi_reduction <add>, %0, %cst [1] : vector<32x32xf32> to vector<32xf32>
    %2 = vector.shape_cast %1 : vector<32xf32> to vector<32x1xf32>
    %cst_1 = arith.constant 3.200000e+01 : f32
    %3 = vector.broadcast %cst_1 : f32 to vector<32x1xf32>
    %4 = arith.divf %2, %3 : vector<32x1xf32>
    %5 = vector.broadcast %4 : vector<32x1xf32> to vector<32x32xf32>
    %6 = arith.subf %0, %5 : vector<32x32xf32>
    %7 = arith.mulf %6, %6 : vector<32x32xf32>
    %cst_2 = arith.constant dense<0.000000e+00> : vector<32xf32>
    %8 = vector.multi_reduction <add>, %7, %cst_2 [1] : vector<32x32xf32> to vector<32xf32>
    %9 = vector.shape_cast %8 : vector<32xf32> to vector<32x1xf32>
    %cst_3 = arith.constant 3.200000e+01 : f32
    %10 = vector.broadcast %cst_3 : f32 to vector<32x1xf32>
    %11 = arith.divf %9, %10 : vector<32x1xf32>
    %cst_4 = arith.constant 9.99999974E-6 : f32
    %12 = vector.broadcast %cst_4 : f32 to vector<32x1xf32>
    %13 = arith.addf %11, %12 : vector<32x1xf32>
    %14 = math.rsqrt %13 : vector<32x1xf32>
    %15 = vector.broadcast %14 : vector<32x1xf32> to vector<32x32xf32>
    %16 = arith.mulf %6, %15 : vector<32x32xf32>
    %c0_5 = arith.constant 0 : index
    %c0_6 = arith.constant 0 : index
    %17 = vector.load %arg2[%c0_5, %c0_6] : memref<1x32xf32, #tpu.memory_space<vmem>>, vector<1x32xf32>
    %18 = vector.broadcast %17 : vector<1x32xf32> to vector<32x32xf32>
    %19 = arith.mulf %16, %18 : vector<32x32xf32>
    %c0_7 = arith.constant 0 : index
    %c0_8 = arith.constant 0 : index
    %20 = vector.load %arg3[%c0_7, %c0_8] : memref<32x32xf32, #tpu.memory_space<vmem>>, vector<32x32xf32>
    tpu.vector_store %arg3[%c0_7, %c0_8], %19 {strides = array<i32>} : memref<32x32xf32, #tpu.memory_space<vmem>>, vector<32x32xf32>,
    return
  }
  func.func @transform_0(%arg0: i32) -> (i32, i32) {
    %c0_i32 = arith.constant 0 : i32
    %c0_i32_0 = arith.constant 0 : i32
    return %arg0, %c0_i32 : i32, i32
  }
  func.func @transform_1(%arg0: i32) -> (i32, i32) {
    %c0_i32 = arith.constant 0 : i32
    %c0_i32_0 = arith.constant 0 : i32
    %c0_i32_1 = arith.constant 0 : i32
    return %c0_i32, %c0_i32_0 : i32, i32
  }
  func.func @transform_2(%arg0: i32) -> (i32, i32) {
    %c0_i32 = arith.constant 0 : i32
    %c0_i32_0 = arith.constant 0 : i32
    return %arg0, %c0_i32 : i32, i32
  }
}

</mosaic_0001>

<llo_original>
// kernel: _lambda_.16
$region0: #{_lambda_.16}
  #allocation0 [shape = 'u32[]', space=smem, size = 0x4, offset = 0x4, fixed_abs, tag = 'smem constant byte address 0x4 - core index']
  #allocation1 [shape = 'u32[144,128]{1,0:T(1,128)}', space=vmem, size = 0x12000, scoped, tag = 'internal scratch']
  #allocation2 [shape = 'f32[32,96]{1,0:T(8,128)}', space=vmem, size = 0x4000, scoped, tag = 'scratch operand']
  %s0 = inlined_call_operand.vmem [shape: f32[32,32], index: 0, kind: input, shape index: {}]
  %s1 = inlined_call_operand.vmem [shape: f32[32,96], index: 1, kind: input, shape index: {}]
  %s2 = inlined_call_operand.vmem [shape: f32[32,96], index: 2, kind: output, shape index: {}]
  %s3 = sld [smem:[#allocation0]]
  $region26: #{_lambda_.16} parent=0
    _
  %s5 = ssub.s32 1, %s3
  %s6 = scalar_select 0, %s5, %s3
  // Predicated region
  $region2: #{_lambda_.16} parent=0 // pred_check
    _
  $region3: #{_lambda_.16} parent=0 // pred_check_branch
    %8 = sbr.rel (0) target = $region5
  $region4: #{_lambda_.16} parent=0 // pred_region
    _
  $region5: #{_lambda_.16} parent=0 // pred_fallthru
    _
  // Predicated region
  $region6: #{_lambda_.16} parent=0 // pred_check
    _
  $region7: #{_lambda_.16} parent=0 // pred_check_branch
    %10 = sbr.rel (0) target = $region9
  $region8: #{_lambda_.16} parent=0 // pred_region
    _
  $region9: #{_lambda_.16} parent=0 // pred_fallthru
    _
  %p11 = scmp.eq.s32.totalorder 0, 0
  // Predicated region
  $region10: #{_lambda_.16} parent=0 // pred_check
    %p12 = pneg %p11
  $region11: #{_lambda_.16} parent=0 // pred_check_branch
    %14 = sbr.rel (%p12) target = $region13
  $region12: #{_lambda_.16} parent=0 // pred_region
    %vm15 = vcmask 785408
    %16 = vst.msk [vmem:[#allocation2] sm:$0xff] %vm15, 0.0
    %17 = vst.msk [vmem:[#allocation2 + $0x8] sm:$0xff] %vm15, 0.0
    %18 = vst.msk [vmem:[#allocation2 + $0x10] sm:$0xff] %vm15, 0.0
    %19 = vst.msk [vmem:[#allocation2 + $0x18] sm:$0xff] %vm15, 0.0
  $region13: #{_lambda_.16} parent=0 // pred_fallthru
    _
  %v20 = vld [vmem:[#allocation2] sm:$0xff]
  %v21 = vld [vmem:[#allocation2 + $0x8] sm:$0xff]
  %v22 = vld [vmem:[#allocation2 + $0x10] sm:$0xff]
  %v23 = vld [vmem:[#allocation2 + $0x18] sm:$0xff]
  %v24 = vld [vmem:[%s0] sm:$0xff]
  %v25 = vld [vmem:[%s0 + $0x8] sm:$0xff]
  %v26 = vld [vmem:[%s0 + $0x10] sm:$0xff]
  %v27 = vld [vmem:[%s0 + $0x18] sm:$0xff]
  %v28 = vld [vmem:[%s1] sm:$0xff]
  %v29 = vld [vmem:[%s1 + $0x8] sm:$0xff]
  %v30 = vld [vmem:[%s1 + $0x10] sm:$0xff]
  %v31 = vld [vmem:[%s1 + $0x18] sm:$0xff]
  %vm32 = vcmask 261120
  %v34 = vsel %vm32, %v24, 0
  %v37 = vsel %vm32, %v25, 0
  %v40 = vsel %vm32, %v26, 0
  %v43 = vsel %vm32, %v27, 0
  %45 = vmatprep.subr.mxu0 0.0
  %46 = vmatpush1.msra.mxu0 %v28
  %47 = vmatprep.subr.mxu0 0.0
  %48 = vmatpush1.msra.mxu0 %v29
  %49 = vmatprep.subr.mxu0 0.0
  %50 = vmatpush1.msra.mxu0 %v30
  %51 = vmatprep.subr.mxu0 0.0
  %52 = vmatpush1.msra.mxu0 %v31
  %53 = vmatprep.subr.mxu0 0.0
  %54 = vmatpush1.msra.mxu0 0.0
  %55 = vmatprep.subr.mxu0 0.0
  %56 = vmatpush1.msra.mxu0 0.0
  %57 = vmatprep.subr.mxu0 0.0
  %58 = vmatpush1.msra.mxu0 0.0
  %59 = vmatprep.subr.mxu0 0.0
  %60 = vmatpush1.msra.mxu0 0.0
  %61 = vmatprep.subr.mxu0 0.0
  %62 = vmatpush1.msra.mxu0 0.0
  %63 = vmatprep.subr.mxu0 0.0
  %64 = vmatpush1.msra.mxu0 0.0
  %65 = vmatprep.subr.mxu0 0.0
  %66 = vmatpush1.msra.mxu0 0.0
  %67 = vmatprep.subr.mxu0 0.0
  %68 = vmatpush1.msra.mxu0 0.0
  %69 = vmatprep.subr.mxu0 0.0
  %70 = vmatpush1.msra.mxu0 0.0
  %71 = vmatprep.subr.mxu0 0.0
  %72 = vmatpush1.msra.mxu0 0.0
  %73 = vmatprep.subr.mxu0 0.0
  %74 = vmatpush1.msra.mxu0 0.0
  %75 = vmatprep.subr.mxu0 0.0
  %76 = vmatpush1.msra.mxu0 0.0
  %77 = vmatprep.subr.mxu0 0.0
  %78 = vmatpush1.msra.mxu0 0.0
  %79 = vmatprep.subr.mxu0 0.0
  %80 = vmatpush1.msra.mxu0 0.0
  %81 = vmatprep.subr.mxu0 0.0
  %82 = vmatpush1.msra.mxu0 0.0
  %83 = vmatprep.subr.mxu0 0.0
  %84 = vmatpush1.msra.mxu0 0.0
  %85 = vmatprep.subr.mxu0 0.0
  %86 = vmatpush1.msra.mxu0 0.0
  %87 = vmatprep.subr.mxu0 0.0
  %88 = vmatpush1.msra.mxu0 0.0
  %89 = vmatprep.subr.mxu0 0.0
  %90 = vmatpush1.msra.mxu0 0.0
  %91 = vmatprep.subr.mxu0 0.0
  %92 = vmatpush1.msra.mxu0 0.0
  %93 = vmatprep.subr.mxu0 0.0
  %94 = vmatpush1.msra.mxu0 0.0
  %95 = vmatprep.subr.mxu0 0.0
  %96 = vmatpush1.msra.mxu0 0.0
  %97 = vmatprep.subr.mxu0 0.0
  %98 = vmatpush1.msra.mxu0 0.0
  %99 = vmatprep.subr.mxu0 0.0
  %100 = vmatpush1.msra.mxu0 0.0
  %101 = vmatprep.subr.mxu0 0.0
  %102 = vmatpush1.msra.mxu0 0.0
  %103 = vmatprep.subr.mxu0 0.0
  %104 = vmatpush1.msra.mxu0 0.0
  %105 = vmatprep.subr.mxu0 0.0
  %106 = vmatpush1.msra.mxu0 0.0
  %107 = vmatprep.subr.mxu0 0.0
  %108 = vmatpush1.msra.mxu0 0.0
  %109 = vmatprep.mubr.f32.mxu0 0.0
  %110 = vmatmul.mubr.f32.gmra.mrb[0].mxu0 %v34
  %v111 = vpop.f32.mrb[0].mxu0
  %v112 = vadd.f32 0.0, %v111
  %v113 = vpop.f32.mrb[0].mxu0
  %114 = vmatprep.mubr.f32.mxu0 0.0
  %115 = vmatmul.mubr.f32.gmra.mrb[0].mxu0 %v37
  %v116 = vpop.f32.mrb[0].mxu0
  %v117 = vadd.f32 0.0, %v116
  %v118 = vpop.f32.mrb[0].mxu0
  %119 = vmatprep.mubr.f32.mxu0 0.0
  %120 = vmatmul.mubr.f32.gmra.mrb[0].mxu0 %v40
  %v121 = vpop.f32.mrb[0].mxu0
  %v122 = vadd.f32 0.0, %v121
  %v123 = vpop.f32.mrb[0].mxu0
  %124 = vmatprep.mubr.f32.mxu0 0.0
  %125 = vmatmul.mubr.f32.gmra.mrb[0].mxu0 %v43
  %v126 = vpop.f32.mrb[0].mxu0
  %v127 = vadd.f32 0.0, %v126
  %v128 = vpop.f32.mrb[0].mxu0
  %129 = vdwg.mxu0
  %v130 = vadd.f32 %v20, %v112
  %v131 = vadd.f32 %v21, %v117
  %v132 = vadd.f32 %v22, %v122
  %v133 = vadd.f32 %v23, %v127
  %vm134 = vcmask 785408
  %135 = vst.msk [vmem:[#allocation2] sm:$0xff] %vm134, %v130
  %136 = vst.msk [vmem:[#allocation2 + $0x8] sm:$0xff] %vm134, %v131
  %137 = vst.msk [vmem:[#allocation2 + $0x10] sm:$0xff] %vm134, %v132
  %138 = vst.msk [vmem:[#allocation2 + $0x18] sm:$0xff] %vm134, %v133
  // Predicated region
  $region14: #{_lambda_.16} parent=0 // pred_check
    %p139 = pneg %p11
  $region15: #{_lambda_.16} parent=0 // pred_check_branch
    %141 = sbr.rel (%p139) target = $region17
  $region16: #{_lambda_.16} parent=0 // pred_region
    %v142 = vld [vmem:[#allocation2] sm:$0xff]
    %v143 = vld [vmem:[#allocation2 + $0x8] sm:$0xff]
    %v144 = vld [vmem:[#allocation2 + $0x10] sm:$0xff]
    %v145 = vld [vmem:[#allocation2 + $0x18] sm:$0xff]
    %146 = vst.msk [vmem:[%s2] sm:$0xff] %vm134, %v142
    %147 = vst.msk [vmem:[%s2 + $0x8] sm:$0xff] %vm134, %v143
    %148 = vst.msk [vmem:[%s2 + $0x10] sm:$0xff] %vm134, %v144
    %149 = vst.msk [vmem:[%s2 + $0x18] sm:$0xff] %vm134, %v145
  $region17: #{_lambda_.16} parent=0 // pred_fallthru
    _
  // Predicated region
  $region18: #{_lambda_.16} parent=0 // pred_check
    _
  $region19: #{_lambda_.16} parent=0 // pred_check_branch
    %151 = sbr.rel (0) target = $region21
  $region20: #{_lambda_.16} parent=0 // pred_region
    _
  $region21: #{_lambda_.16} parent=0 // pred_fallthru
    _
  // Predicated region
  $region22: #{_lambda_.16} parent=0 // pred_check
    _
  $region23: #{_lambda_.16} parent=0 // pred_check_branch
    %153 = sbr.rel (0) target = $region25
  $region24: #{_lambda_.16} parent=0 // pred_region
    _
  $region25: #{_lambda_.16} parent=0 // pred_fallthru
    _

// kernel: _lambda_.15
$region0: #{_lambda_.15}
  #allocation0 [shape = 'u32[]', space=smem, size = 0x4, offset = 0x4, fixed_abs, tag = 'smem constant byte address 0x4 - core index']
  #allocation1 [shape = 'u32[144,128]{1,0:T(1,128)}', space=vmem, size = 0x12000, scoped, tag = 'internal scratch']
  %s0 = inlined_call_operand.vmem [shape: f32[32,32], index: 0, kind: input, shape index: {}]
  %s1 = inlined_call_operand.vmem [shape: f32[1,32], index: 1, kind: input, shape index: {}]
  %s2 = inlined_call_operand.vmem [shape: f32[32,32], index: 2, kind: output, shape index: {}]
  %s3 = sld [smem:[#allocation0]]
  $region18: #{_lambda_.15} parent=0
    _
  %s5 = ssub.s32 1, %s3
  %s6 = scalar_select 0, %s5, %s3
  // Predicated region
  $region2: #{_lambda_.15} parent=0 // pred_check
    _
  $region3: #{_lambda_.15} parent=0 // pred_check_branch
    %8 = sbr.rel (0) target = $region5
  $region4: #{_lambda_.15} parent=0 // pred_region
    _
  $region5: #{_lambda_.15} parent=0 // pred_fallthru
    _
  // Predicated region
  $region6: #{_lambda_.15} parent=0 // pred_check
    _
  $region7: #{_lambda_.15} parent=0 // pred_check_branch
    %10 = sbr.rel (0) target = $region9
  $region8: #{_lambda_.15} parent=0 // pred_region
    _
  $region9: #{_lambda_.15} parent=0 // pred_fallthru
    _
  %v11 = vld [vmem:[%s0] sm:$0xff]
  %v12 = vld [vmem:[%s0 + $0x8] sm:$0xff]
  %v13 = vld [vmem:[%s0 + $0x10] sm:$0xff]
  %v14 = vld [vmem:[%s0 + $0x18] sm:$0xff]
  %vm15 = vcmask 261120
  %v16 = vsel %vm15, %v11, 0.0
  %17 = vadd.xlane.f32.xlu0 %v16
  %v18 = vpop.xlane.xlu0 %17
  %v19 = vsel %vm15, %v12, 0.0
  %20 = vadd.xlane.f32.xlu0 %v19
  %v21 = vpop.xlane.xlu0 %20
  %v22 = vsel %vm15, %v13, 0.0
  %23 = vadd.xlane.f32.xlu0 %v22
  %v24 = vpop.xlane.xlu0 %23
  %v25 = vsel %vm15, %v14, 0.0
  %26 = vadd.xlane.f32.xlu0 %v25
  %v27 = vpop.xlane.xlu0 %26
  %v28 = vrcp.pop 32.0
  %v29 = vmul.f32 %v18, %v28
  %v30 = vmul.f32 %v21, %v28
  %v31 = vmul.f32 %v24, %v28
  %v32 = vmul.f32 %v27, %v28
  %v33 = vsub.f32 %v11, %v29
  %v34 = vsub.f32 %v12, %v30
  %v35 = vsub.f32 %v13, %v31
  %v36 = vsub.f32 %v14, %v32
  %v37 = vmul.f32 %v33, %v33
  %v38 = vmul.f32 %v34, %v34
  %v39 = vmul.f32 %v35, %v35
  %v40 = vmul.f32 %v36, %v36
  %v41 = vsel %vm15, %v37, 0.0
  %42 = vadd.xlane.f32.xlu0 %v41
  %v43 = vpop.xlane.xlu0 %42
  %v44 = vsel %vm15, %v38, 0.0
  %45 = vadd.xlane.f32.xlu0 %v44
  %v46 = vpop.xlane.xlu0 %45
  %v47 = vsel %vm15, %v39, 0.0
  %48 = vadd.xlane.f32.xlu0 %v47
  %v49 = vpop.xlane.xlu0 %48
  %v50 = vsel %vm15, %v40, 0.0
  %51 = vadd.xlane.f32.xlu0 %v50
  %v52 = vpop.xlane.xlu0 %51
  %v53 = vmul.f32 %v43, %v28
  %v54 = vmul.f32 %v46, %v28
  %v55 = vmul.f32 %v49, %v28
  %v56 = vmul.f32 %v52, %v28
  %v57 = vadd.f32 %v53, 1e-05
  %v58 = vadd.f32 %v54, 1e-05
  %v59 = vadd.f32 %v55, 1e-05
  %v60 = vadd.f32 %v56, 1e-05
  %v61 = vrsqrt.pop %v57
  %v62 = vrsqrt.pop %v58
  %v63 = vrsqrt.pop %v59
  %v64 = vrsqrt.pop %v60
  %v65 = vmul.f32 %v33, %v61
  %v66 = vmul.f32 %v34, %v62
  %v67 = vmul.f32 %v35, %v63
  %v68 = vmul.f32 %v36, %v64
  %v69 = vld [vmem:[%s1] sm:$0x1]
  %v71 = vlaneseq
  %v72 = vshrl.u32 %v71, 7
  %v73 = vsub.s32 0, %v72
  %v74 = vrot.slane %v69, %v73
  %v76 = vmul.f32 %v65, %v74
  %v77 = vmul.f32 %v66, %v74
  %v78 = vmul.f32 %v67, %v74
  %v79 = vmul.f32 %v68, %v74
  %80 = vst.msk [vmem:[%s2] sm:$0xff] %vm15, %v76
  %81 = vst.msk [vmem:[%s2 + $0x8] sm:$0xff] %vm15, %v77
  %82 = vst.msk [vmem:[%s2 + $0x10] sm:$0xff] %vm15, %v78
  %83 = vst.msk [vmem:[%s2 + $0x18] sm:$0xff] %vm15, %v79
  // Predicated region
  $region10: #{_lambda_.15} parent=0 // pred_check
    _
  $region11: #{_lambda_.15} parent=0 // pred_check_branch
    %85 = sbr.rel (0) target = $region13
  $region12: #{_lambda_.15} parent=0 // pred_region
    _
  $region13: #{_lambda_.15} parent=0 // pred_fallthru
    _
  // Predicated region
  $region14: #{_lambda_.15} parent=0 // pred_check
    _
  $region15: #{_lambda_.15} parent=0 // pred_check_branch
    %87 = sbr.rel (0) target = $region17
  $region16: #{_lambda_.15} parent=0 // pred_region
    _
  $region17: #{_lambda_.15} parent=0 // pred_fallthru
    _

// kernel: _lambda_.18
$region0: #{_lambda_.18}
  #allocation0 [shape = 'u32[]', space=smem, size = 0x4, offset = 0x4, fixed_abs, tag = 'smem constant byte address 0x4 - core index']
  #allocation1 [shape = 'u32[144,128]{1,0:T(1,128)}', space=vmem, size = 0x12000, scoped, tag = 'internal scratch']
  #allocation2 [shape = 'f32[32,32]{1,0:T(8,128)}', space=vmem, size = 0x4000, scoped, tag = 'scratch operand']
  %s0 = inlined_call_operand.vmem [shape: f32[32,32], index: 0, kind: input, shape index: {}]
  %s1 = inlined_call_operand.vmem [shape: f32[32,32], index: 1, kind: input, shape index: {}]
  %s2 = inlined_call_operand.vmem [shape: f32[32,32], index: 2, kind: input, shape index: {}]
  %s3 = inlined_call_operand.vmem [shape: f32[32,32], index: 3, kind: output, shape index: {}]
  %s4 = sld [smem:[#allocation0]]
  $region30: #{_lambda_.18} parent=0
    _
  %s6 = ssub.s32 1, %s4
  %s7 = scalar_select 0, %s6, %s4
  // Predicated region
  $region2: #{_lambda_.18} parent=0 // pred_check
    _
  $region3: #{_lambda_.18} parent=0 // pred_check_branch
    %9 = sbr.rel (0) target = $region5
  $region4: #{_lambda_.18} parent=0 // pred_region
    _
  $region5: #{_lambda_.18} parent=0 // pred_fallthru
    _
  // Predicated region
  $region6: #{_lambda_.18} parent=0 // pred_check
    _
  $region7: #{_lambda_.18} parent=0 // pred_check_branch
    %11 = sbr.rel (0) target = $region9
  $region8: #{_lambda_.18} parent=0 // pred_region
    _
  $region9: #{_lambda_.18} parent=0 // pred_fallthru
    _
  // Predicated region
  $region10: #{_lambda_.18} parent=0 // pred_check
    _
  $region11: #{_lambda_.18} parent=0 // pred_check_branch
    %13 = sbr.rel (0) target = $region13
  $region12: #{_lambda_.18} parent=0 // pred_region
    _
  $region13: #{_lambda_.18} parent=0 // pred_fallthru
    _
  %p14 = scmp.eq.s32.totalorder 0, 0
  // Predicated region
  $region14: #{_lambda_.18} parent=0 // pred_check
    %p15 = pneg %p14
  $region15: #{_lambda_.18} parent=0 // pred_check_branch
    %17 = sbr.rel (%p15) target = $region17
  $region16: #{_lambda_.18} parent=0 // pred_region
    %vm18 = vcmask 261120
    %19 = vst.msk [vmem:[#allocation2] sm:$0xff] %vm18, 0.0
    %20 = vst.msk [vmem:[#allocation2 + $0x8] sm:$0xff] %vm18, 0.0
    %21 = vst.msk [vmem:[#allocation2 + $0x10] sm:$0xff] %vm18, 0.0
    %22 = vst.msk [vmem:[#allocation2 + $0x18] sm:$0xff] %vm18, 0.0
  $region17: #{_lambda_.18} parent=0 // pred_fallthru
    _
  %v23 = vld [vmem:[#allocation2] sm:$0xff]
  %v24 = vld [vmem:[#allocation2 + $0x8] sm:$0xff]
  %v25 = vld [vmem:[#allocation2 + $0x10] sm:$0xff]
  %v26 = vld [vmem:[#allocation2 + $0x18] sm:$0xff]
  %v27 = vld [vmem:[%s0] sm:$0xff]
  %v28 = vld [vmem:[%s0 + $0x8] sm:$0xff]
  %v29 = vld [vmem:[%s0 + $0x10] sm:$0xff]
  %v30 = vld [vmem:[%s0 + $0x18] sm:$0xff]
  %v31 = vld [vmem:[%s1] sm:$0xff]
  %v32 = vld [vmem:[%s1 + $0x8] sm:$0xff]
  %v33 = vld [vmem:[%s1 + $0x10] sm:$0xff]
  %v34 = vld [vmem:[%s1 + $0x18] sm:$0xff]
  %vm35 = vcmask 261120
  %v37 = vsel %vm35, %v27, 0
  %v40 = vsel %vm35, %v28, 0
  %v43 = vsel %vm35, %v29, 0
  %v46 = vsel %vm35, %v30, 0
  %48 = vmatprep.subr.mxu0 0.0
  %49 = vmatpush1.msra.mxu0 %v31
  %50 = vmatprep.subr.mxu0 0.0
  %51 = vmatpush1.msra.mxu0 %v32
  %52 = vmatprep.subr.mxu0 0.0
  %53 = vmatpush1.msra.mxu0 %v33
  %54 = vmatprep.subr.mxu0 0.0
  %55 = vmatpush1.msra.mxu0 %v34
  %56 = vmatprep.subr.mxu0 0.0
  %57 = vmatpush1.msra.mxu0 0.0
  %58 = vmatprep.subr.mxu0 0.0
  %59 = vmatpush1.msra.mxu0 0.0
  %60 = vmatprep.subr.mxu0 0.0
  %61 = vmatpush1.msra.mxu0 0.0
  %62 = vmatprep.subr.mxu0 0.0
  %63 = vmatpush1.msra.mxu0 0.0
  %64 = vmatprep.subr.mxu0 0.0
  %65 = vmatpush1.msra.mxu0 0.0
  %66 = vmatprep.subr.mxu0 0.0
  %67 = vmatpush1.msra.mxu0 0.0
  %68 = vmatprep.subr.mxu0 0.0
  %69 = vmatpush1.msra.mxu0 0.0
  %70 = vmatprep.subr.mxu0 0.0
  %71 = vmatpush1.msra.mxu0 0.0
  %72 = vmatprep.subr.mxu0 0.0
  %73 = vmatpush1.msra.mxu0 0.0
  %74 = vmatprep.subr.mxu0 0.0
  %75 = vmatpush1.msra.mxu0 0.0
  %76 = vmatprep.subr.mxu0 0.0
  %77 = vmatpush1.msra.mxu0 0.0
  %78 = vmatprep.subr.mxu0 0.0
  %79 = vmatpush1.msra.mxu0 0.0
  %80 = vmatprep.subr.mxu0 0.0
  %81 = vmatpush1.msra.mxu0 0.0
  %82 = vmatprep.subr.mxu0 0.0
  %83 = vmatpush1.msra.mxu0 0.0
  %84 = vmatprep.subr.mxu0 0.0
  %85 = vmatpush1.msra.mxu0 0.0
  %86 = vmatprep.subr.mxu0 0.0
  %87 = vmatpush1.msra.mxu0 0.0
  %88 = vmatprep.subr.mxu0 0.0
  %89 = vmatpush1.msra.mxu0 0.0
  %90 = vmatprep.subr.mxu0 0.0
  %91 = vmatpush1.msra.mxu0 0.0
  %92 = vmatprep.subr.mxu0 0.0
  %93 = vmatpush1.msra.mxu0 0.0
  %94 = vmatprep.subr.mxu0 0.0
  %95 = vmatpush1.msra.mxu0 0.0
  %96 = vmatprep.subr.mxu0 0.0
  %97 = vmatpush1.msra.mxu0 0.0
  %98 = vmatprep.subr.mxu0 0.0
  %99 = vmatpush1.msra.mxu0 0.0
  %100 = vmatprep.subr.mxu0 0.0
  %101 = vmatpush1.msra.mxu0 0.0
  %102 = vmatprep.subr.mxu0 0.0
  %103 = vmatpush1.msra.mxu0 0.0
  %104 = vmatprep.subr.mxu0 0.0
  %105 = vmatpush1.msra.mxu0 0.0
  %106 = vmatprep.subr.mxu0 0.0
  %107 = vmatpush1.msra.mxu0 0.0
  %108 = vmatprep.subr.mxu0 0.0
  %109 = vmatpush1.msra.mxu0 0.0
  %110 = vmatprep.subr.mxu0 0.0
  %111 = vmatpush1.msra.mxu0 0.0
  %112 = vmatprep.mubr.f32.mxu0 0.0
  %113 = vmatmul.mubr.f32.gmra.mrb[0].mxu0 %v37
  %v114 = vpop.f32.mrb[0].mxu0
  %v115 = vadd.f32 0.0, %v114
  %v116 = vpop.f32.mrb[0].mxu0
  %117 = vmatprep.mubr.f32.mxu0 0.0
  %118 = vmatmul.mubr.f32.gmra.mrb[0].mxu0 %v40
  %v119 = vpop.f32.mrb[0].mxu0
  %v120 = vadd.f32 0.0, %v119
  %v121 = vpop.f32.mrb[0].mxu0
  %122 = vmatprep.mubr.f32.mxu0 0.0
  %123 = vmatmul.mubr.f32.gmra.mrb[0].mxu0 %v43
  %v124 = vpop.f32.mrb[0].mxu0
  %v125 = vadd.f32 0.0, %v124
  %v126 = vpop.f32.mrb[0].mxu0
  %127 = vmatprep.mubr.f32.mxu0 0.0
  %128 = vmatmul.mubr.f32.gmra.mrb[0].mxu0 %v46
  %v129 = vpop.f32.mrb[0].mxu0
  %v130 = vadd.f32 0.0, %v129
  %v131 = vpop.f32.mrb[0].mxu0
  %132 = vdwg.mxu0
  %v133 = vadd.f32 %v23, %v115
  %v134 = vadd.f32 %v24, %v120
  %v135 = vadd.f32 %v25, %v125
  %v136 = vadd.f32 %v26, %v130
  %137 = vst.msk [vmem:[#allocation2] sm:$0xff] %vm35, %v133
  %138 = vst.msk [vmem:[#allocation2 + $0x8] sm:$0xff] %vm35, %v134
  %139 = vst.msk [vmem:[#allocation2 + $0x10] sm:$0xff] %vm35, %v135
  %140 = vst.msk [vmem:[#allocation2 + $0x18] sm:$0xff] %vm35, %v136
  // Predicated region
  $region18: #{_lambda_.18} parent=0 // pred_check
    %p141 = pneg %p14
  $region19: #{_lambda_.18} parent=0 // pred_check_branch
    %143 = sbr.rel (%p141) target = $region21
  $region20: #{_lambda_.18} parent=0 // pred_region
    %v144 = vld [vmem:[#allocation2] sm:$0xff]
    %v145 = vld [vmem:[#allocation2 + $0x8] sm:$0xff]
    %v146 = vld [vmem:[#allocation2 + $0x10] sm:$0xff]
    %v147 = vld [vmem:[#allocation2 + $0x18] sm:$0xff]
    %v148 = vld [vmem:[%s2] sm:$0xff]
    %v149 = vld [vmem:[%s2 + $0x8] sm:$0xff]
    %v150 = vld [vmem:[%s2 + $0x10] sm:$0xff]
    %v151 = vld [vmem:[%s2 + $0x18] sm:$0xff]
    %v152 = vadd.f32 %v144, %v148
    %v153 = vadd.f32 %v145, %v149
    %v154 = vadd.f32 %v146, %v150
    %v155 = vadd.f32 %v147, %v151
    %156 = vst.msk [vmem:[%s3] sm:$0xff] %vm35, %v152
    %157 = vst.msk [vmem:[%s3 + $0x8] sm:$0xff] %vm35, %v153
    %158 = vst.msk [vmem:[%s3 + $0x10] sm:$0xff] %vm35, %v154
    %159 = vst.msk [vmem:[%s3 + $0x18] sm:$0xff] %vm35, %v155
  $region21: #{_lambda_.18} parent=0 // pred_fallthru
    _
  // Predicated region
  $region22: #{_lambda_.18} parent=0 // pred_check
    _
  $region23: #{_lambda_.18} parent=0 // pred_check_branch
    %161 = sbr.rel (0) target = $region25
  $region24: #{_lambda_.18} parent=0 // pred_region
    _
  $region25: #{_lambda_.18} parent=0 // pred_fallthru
    _
  // Predicated region
  $region26: #{_lambda_.18} parent=0 // pred_check
    _
  $region27: #{_lambda_.18} parent=0 // pred_check_branch
    %163 = sbr.rel (0) target = $region29
  $region28: #{_lambda_.18} parent=0 // pred_region
    _
  $region29: #{_lambda_.18} parent=0 // pred_fallthru
    _

// kernel: _lambda_.17
$region0: #{_lambda_.17}
  #allocation0 [shape = 'u32[]', space=smem, size = 0x4, offset = 0x4, fixed_abs, tag = 'smem constant byte address 0x4 - core index']
  #allocation1 [shape = 'u32[144,128]{1,0:T(1,128)}', space=vmem, size = 0x12000, scoped, tag = 'internal scratch']
  %s0 = inlined_call_operand.vmem [shape: f32[2,16,32], index: 0, kind: input, shape index: {}]
  %s1 = inlined_call_operand.vmem [shape: f32[2,16,32], index: 1, kind: input, shape index: {}]
  %s2 = inlined_call_operand.vmem [shape: f32[2,16,32], index: 2, kind: input, shape index: {}]
  %s3 = inlined_call_operand.vmem [shape: f32[2,16,32], index: 3, kind: output, shape index: {}]
  %s4 = sld [smem:[#allocation0]]
  $region45: #{_lambda_.17} parent=0
    _
  %s6 = ssub.s32 1, %s4
  %s7 = scalar_select 0, %s6, %s4
  loop: start=0, step=1, limit=4
  $region2: #{_lambda_.17} parent=0 // loop_pre_header
    _
  $region3: #{_lambda_.17} parent=0 // loop_header
    %s9 = sphi 0, %s13
    %p10 = scmp.ge.s32.totalorder %s9, 4
    %s19 = sphi 0, %s21
    %s22 = sphi 0, %s19
    %s23 = sphi 0, %s22
    %s39 = sphi 0, %s23
    %s45 = sphi 0, %s47
    %s48 = sphi 0, %s45
    %s49 = sphi 0, %s48
    %s65 = sphi 0, %s49
    %s71 = sphi 0, %s73
    %s74 = sphi 0, %s71
    %s75 = sphi 0, %s74
    %s91 = sphi 0, %s75
    %s97 = sphi 0, %s99
    %s100 = sphi 0, %s97
    %s101 = sphi 0, %s100
    %s117 = sphi 0, %s101
  $region4: #{_lambda_.17} parent=0 // loop_header_branch
    %12 = sbr.rel (%p10) target = $region8
  $region5: #{_lambda_.17} parent=0 // loop_body
    %s14 = ssub.s32 %s9, 1
    %s15 = ssub.s32 %s9, 2
    %s16 = sadd.s32 %s9, 1
    %s17 = ssub.s32 %s9, %s16
    %p18 = scmp.eq.s32.totalorder %s17, 0
    %s20 = sadd.s32 %s19, 1
    %s21 = scalar_select %p18, %s19, %s20
    %p24 = pneg %p18
    %p25 = scmp.eq.s32.totalorder %s9, 1
    %p26 = por %p24, %p25
    %p27 = scmp.ne.s32.totalorder %s19, %s22
    %p28 = scmp.eq.s32.totalorder %s9, 0
    %p29 = por %p27, %p28
    %p30 = scmp.ne.s32.totalorder %s19, %s22
    %p31 = scmp.eq.s32.totalorder %s14, 1
    %p32 = por %p30, %p31
    %p33 = scmp.ne.s32.totalorder %s22, %s23
    %p34 = scmp.eq.s32.totalorder %s14, 0
    %p35 = por %p33, %p34
    %p36 = scmp.ne.s32.totalorder %s22, %s23
    %p37 = scmp.eq.s32.totalorder %s15, 1
    %p38 = por %p36, %p37
    %p40 = scmp.ne.s32.totalorder %s23, %s39
    %p41 = scmp.eq.s32.totalorder %s15, 0
    %p42 = por %p40, %p41
    %s43 = ssub.s32 %s9, %s16
    %p44 = scmp.eq.s32.totalorder %s43, 0
    %s46 = sadd.s32 %s45, 1
    %s47 = scalar_select %p44, %s45, %s46
    %p50 = pneg %p44
    %p51 = scmp.eq.s32.totalorder %s9, 1
    %p52 = por %p50, %p51
    %p53 = scmp.ne.s32.totalorder %s45, %s48
    %p54 = scmp.eq.s32.totalorder %s9, 0
    %p55 = por %p53, %p54
    %p56 = scmp.ne.s32.totalorder %s45, %s48
    %p57 = scmp.eq.s32.totalorder %s14, 1
    %p58 = por %p56, %p57
    %p59 = scmp.ne.s32.totalorder %s48, %s49
    %p60 = scmp.eq.s32.totalorder %s14, 0
    %p61 = por %p59, %p60
    %p62 = scmp.ne.s32.totalorder %s48, %s49
    %p63 = scmp.eq.s32.totalorder %s15, 1
    %p64 = por %p62, %p63
    %p66 = scmp.ne.s32.totalorder %s49, %s65
    %p67 = scmp.eq.s32.totalorder %s15, 0
    %p68 = por %p66, %p67
    %s69 = ssub.s32 %s9, %s16
    %p70 = scmp.eq.s32.totalorder %s69, 0
    %s72 = sadd.s32 %s71, 1
    %s73 = scalar_select %p70, %s71, %s72
    %p76 = pneg %p70
    %p77 = scmp.eq.s32.totalorder %s9, 1
    %p78 = por %p76, %p77
    %p79 = scmp.ne.s32.totalorder %s71, %s74
    %p80 = scmp.eq.s32.totalorder %s9, 0
    %p81 = por %p79, %p80
    %p82 = scmp.ne.s32.totalorder %s71, %s74
    %p83 = scmp.eq.s32.totalorder %s14, 1
    %p84 = por %p82, %p83
    %p85 = scmp.ne.s32.totalorder %s74, %s75
    %p86 = scmp.eq.s32.totalorder %s14, 0
    %p87 = por %p85, %p86
    %p88 = scmp.ne.s32.totalorder %s74, %s75
    %p89 = scmp.eq.s32.totalorder %s15, 1
    %p90 = por %p88, %p89
    %p92 = scmp.ne.s32.totalorder %s75, %s91
    %p93 = scmp.eq.s32.totalorder %s15, 0
    %p94 = por %p92, %p93
    %s95 = ssub.s32 %s9, %s16
    %p96 = scmp.eq.s32.totalorder %s95, 0
    %s98 = sadd.s32 %s97, 1
    %s99 = scalar_select %p96, %s97, %s98
    %p102 = pneg %p96
    %p103 = scmp.eq.s32.totalorder %s9, 1
    %p104 = por %p102, %p103
    %p105 = scmp.ne.s32.totalorder %s97, %s100
    %p106 = scmp.eq.s32.totalorder %s9, 0
    %p107 = por %p105, %p106
    %p108 = scmp.ne.s32.totalorder %s97, %s100
    %p109 = scmp.eq.s32.totalorder %s14, 1
    %p110 = por %p108, %p109
    %p111 = scmp.ne.s32.totalorder %s100, %s101
    %p112 = scmp.eq.s32.totalorder %s14, 0
    %p113 = por %p111, %p112
    %p114 = scmp.ne.s32.totalorder %s100, %s101
    %p115 = scmp.eq.s32.totalorder %s15, 1
    %p116 = por %p114, %p115
    %p118 = scmp.ne.s32.totalorder %s101, %s117
    %p119 = scmp.eq.s32.totalorder %s15, 0
    %p120 = por %p118, %p119
    %p121 = scmp.le.s32.totalorder 1, %s9
    %p122 = scmp.lt.s32.totalorder %s9, 3
    %p123 = pnand %p121, %p122
    %p124 = pneg %p123
    // Predicated region
    $region9: #{_lambda_.17} parent=5 // pred_check
      _
    $region10: #{_lambda_.17} parent=5 // pred_check_branch
      %126 = sbr.rel (%p123) target = $region12
    $region11: #{_lambda_.17} parent=5 // pred_region
      %s127 = ssub.s32 %s9, 1
    $region12: #{_lambda_.17} parent=5 // pred_fallthru
      _
    %p128 = scmp.lt.s32.totalorder %s9, 2
    // Predicated region
    $region13: #{_lambda_.17} parent=5 // pred_check
      %p129 = pneg %p128
    $region14: #{_lambda_.17} parent=5 // pred_check_branch
      %131 = sbr.rel (%p129) target = $region16
    $region15: #{_lambda_.17} parent=5 // pred_region
      // Predicated region
      $region17: #{_lambda_.17} parent=15 // pred_check
        %p132 = pneg %p29
      $region18: #{_lambda_.17} parent=15 // pred_check_branch
        %134 = sbr.rel (%p132) target = $region20
      $region19: #{_lambda_.17} parent=15 // pred_region
        %p135 = scmp.lt.s32.totalorder %s9, 1
        %s136 = scalar_select %p135, %s9, 1
        %s137 = smul.addr %s136, 2
        %s138 = smul.addr %s137, 8
        %s139 = scalar_lea.vmem %s0, %s138
      $region20: #{_lambda_.17} parent=15 // pred_fallthru
        _
      // Predicated region
      $region21: #{_lambda_.17} parent=15 // pred_check
        %p140 = pneg %p55
      $region22: #{_lambda_.17} parent=15 // pred_check_branch
        %142 = sbr.rel (%p140) target = $region24
      $region23: #{_lambda_.17} parent=15 // pred_region
        %p143 = scmp.lt.s32.totalorder %s9, 1
        %s144 = scalar_select %p143, %s9, 1
        %s145 = smul.addr %s144, 2
        %s146 = smul.addr %s145, 8
        %s147 = scalar_lea.vmem %s1, %s146
      $region24: #{_lambda_.17} parent=15 // pred_fallthru
        _
      // Predicated region
      $region25: #{_lambda_.17} parent=15 // pred_check
        %p148 = pneg %p81
      $region26: #{_lambda_.17} parent=15 // pred_check_branch
        %150 = sbr.rel (%p148) target = $region28
      $region27: #{_lambda_.17} parent=15 // pred_region
        %p151 = scmp.lt.s32.totalorder %s9, 1
        %s152 = scalar_select %p151, %s9, 1
        %s153 = smul.addr %s152, 2
        %s154 = smul.addr %s153, 8
        %s155 = scalar_lea.vmem %s2, %s154
      $region28: #{_lambda_.17} parent=15 // pred_fallthru
        _
    $region16: #{_lambda_.17} parent=5 // pred_fallthru
      _
    %p156 = scmp.le.s32.totalorder 1, %s9
    %p157 = scmp.lt.s32.totalorder %s9, 3
    %p158 = pnand %p156, %p157
    %p159 = pneg %p158
    // Predicated region
    $region29: #{_lambda_.17} parent=5 // pred_check
      _
    $region30: #{_lambda_.17} parent=5 // pred_check_branch
      %161 = sbr.rel (%p158) target = $region32
    $region31: #{_lambda_.17} parent=5 // pred_region
      %s162 = ssub.s32 %s9, 1
      %p163 = scmp.lt.s32.totalorder %s14, 1
      %s164 = scalar_select %p163, %s14, 1
      %s165 = smul.addr %s164, 2
      %s166 = smul.addr %s165, 8
      %s167 = scalar_lea.vmem %s0, %s166
      %p168 = pneg %p35
      %p169 = pneg %p32
      %p170 = scmp.lt.s32.totalorder %s14, 1
      %s171 = scalar_select %p170, %s14, 1
      %s172 = smul.addr %s171, 2
      %s173 = smul.addr %s172, 8
      %s174 = scalar_lea.vmem %s1, %s173
      %p175 = pneg %p61
      %p176 = pneg %p58
      %p177 = scmp.lt.s32.totalorder %s14, 1
      %s178 = scalar_select %p177, %s14, 1
      %s179 = smul.addr %s178, 2
      %s180 = smul.addr %s179, 8
      %s181 = scalar_lea.vmem %s2, %s180
      %p182 = pneg %p87
      %p183 = pneg %p84
      %p184 = pneg %p113
      %p185 = pneg %p110
      %p186 = scmp.lt.s32.totalorder %s14, 1
      %s187 = scalar_select %p186, %s14, 1
      %s188 = smul.addr %s187, 2
      %s189 = smul.addr %s188, 8
      %s190 = scalar_lea.vmem %s3, %s189
      %p191 = scmp.lt.s32.totalorder %s14, 1
      %s192 = scalar_select %p191, %s14, 1
      %s193 = smul.addr %s192, 2
      %s194 = smul.addr %s193, 8
      %s195 = scalar_lea.vmem %s0, %s194
      %p196 = scmp.lt.s32.totalorder %s14, 1
      %s197 = scalar_select %p196, %s14, 1
      %s198 = smul.addr %s197, 2
      %s199 = smul.addr %s198, 8
      %s200 = scalar_lea.vmem %s1, %s199
      %p201 = scmp.lt.s32.totalorder %s14, 1
      %s202 = scalar_select %p201, %s14, 1
      %s203 = smul.addr %s202, 2
      %s204 = smul.addr %s203, 8
      %s205 = scalar_lea.vmem %s2, %s204
      %p206 = scmp.lt.s32.totalorder %s14, 1
      %s207 = scalar_select %p206, %s14, 1
      %s208 = smul.addr %s207, 2
      %s209 = smul.addr %s208, 8
      %s210 = scalar_lea.vmem %s3, %s209
      %v211 = vld [vmem:[%s195] sm:$0xff]
      %v212 = vld [vmem:[%s195 + $0x8] sm:$0xff]
      %v213 = vld [vmem:[%s200] sm:$0xff]
      %v214 = vld [vmem:[%s200 + $0x8] sm:$0xff]
      %v215 = vld [vmem:[%s205] sm:$0xff]
      %v216 = vld [vmem:[%s205 + $0x8] sm:$0xff]
      %v217 = vlaneseq
      %v218 = vshrl.u32 %v217, 7
      %v219 = vadd.s32 %v218, 8
      %v220 = vlaneseq
      %v221 = vand.u32 %v220, 127
      %vm222 = vcmp.le.s32.totalorder %v221, %v218
      %vm223 = vcmp.le.s32.totalorder %v221, %v219
      %v224 = vmul.f32 %v211, 0.35355338
      %v225 = vmul.f32 %v212, 0.35355338
      %vm226 = vcmask 64512
      %v228 = vsel %vm226, %v224, 0
      %v231 = vsel %vm226, %v225, 0
      %v234 = vsel %vm226, %v213, 0
      %v237 = vsel %vm226, %v214, 0
      %239 = vmatprep.subr.mxu0 0.0
      %240 = vmatpush1.xpose.msra.mxu0 %v234
      %241 = vmatprep.subr.mxu0 0.0
      %242 = vmatpush1.xpose.msra.mxu0 %v237
      %243 = vmatprep.subr.mxu0 0.0
      %244 = vmatpush1.xpose.msra.mxu0 0.0
      %245 = vmatprep.subr.mxu0 0.0
      %246 = vmatpush1.xpose.msra.mxu0 0.0
      %247 = vmatprep.subr.mxu0 0.0
      %248 = vmatpush1.xpose.msra.mxu0 0.0
      %249 = vmatprep.subr.mxu0 0.0
      %250 = vmatpush1.xpose.msra.mxu0 0.0
      %251 = vmatprep.subr.mxu0 0.0
      %252 = vmatpush1.xpose.msra.mxu0 0.0
      %253 = vmatprep.subr.mxu0 0.0
      %254 = vmatpush1.xpose.msra.mxu0 0.0
      %255 = vmatprep.subr.mxu0 0.0
      %256 = vmatpush1.xpose.msra.mxu0 0.0
      %257 = vmatprep.subr.mxu0 0.0
      %258 = vmatpush1.xpose.msra.mxu0 0.0
      %259 = vmatprep.subr.mxu0 0.0
      %260 = vmatpush1.xpose.msra.mxu0 0.0
      %261 = vmatprep.subr.mxu0 0.0
      %262 = vmatpush1.xpose.msra.mxu0 0.0
      %263 = vmatprep.subr.mxu0 0.0
      %264 = vmatpush1.xpose.msra.mxu0 0.0
      %265 = vmatprep.subr.mxu0 0.0
      %266 = vmatpush1.xpose.msra.mxu0 0.0
      %267 = vmatprep.subr.mxu0 0.0
      %268 = vmatpush1.xpose.msra.mxu0 0.0
      %269 = vmatprep.subr.mxu0 0.0
      %270 = vmatpush1.xpose.msra.mxu0 0.0
      %271 = vmatprep.subr.mxu0 0.0
      %272 = vmatpush1.xpose.msra.mxu0 0.0
      %273 = vmatprep.subr.mxu0 0.0
      %274 = vmatpush1.xpose.msra.mxu0 0.0
      %275 = vmatprep.subr.mxu0 0.0
      %276 = vmatpush1.xpose.msra.mxu0 0.0
      %277 = vmatprep.subr.mxu0 0.0
      %278 = vmatpush1.xpose.msra.mxu0 0.0
      %279 = vmatprep.subr.mxu0 0.0
      %280 = vmatpush1.xpose.msra.mxu0 0.0
      %281 = vmatprep.subr.mxu0 0.0
      %282 = vmatpush1.xpose.msra.mxu0 0.0
      %283 = vmatprep.subr.mxu0 0.0
      %284 = vmatpush1.xpose.msra.mxu0 0.0
      %285 = vmatprep.subr.mxu0 0.0
      %286 = vmatpush1.xpose.msra.mxu0 0.0
      %287 = vmatprep.subr.mxu0 0.0
      %288 = vmatpush1.xpose.msra.mxu0 0.0
      %289 = vmatprep.subr.mxu0 0.0
      %290 = vmatpush1.xpose.msra.mxu0 0.0
      %291 = vmatprep.subr.mxu0 0.0
      %292 = vmatpush1.xpose.msra.mxu0 0.0
      %293 = vmatprep.subr.mxu0 0.0
      %294 = vmatpush1.xpose.msra.mxu0 0.0
      %295 = vmatprep.subr.mxu0 0.0
      %296 = vmatpush1.xpose.msra.mxu0 0.0
      %297 = vmatprep.subr.mxu0 0.0
      %298 = vmatpush1.xpose.msra.mxu0 0.0
      %299 = vmatprep.subr.mxu0 0.0
      %300 = vmatpush1.xpose.msra.mxu0 0.0
      %301 = vmatprep.subr.mxu0 0.0
      %302 = vmatpush1.xpose.msra.mxu0 0.0
      %303 = vmatprep.mubr.f32.mxu0 0.0
      %304 = vmatmul.mubr.f32.gmra.mrb[0].mxu0 %v228
      %v305 = vpop.f32.mrb[0].mxu0
      %v306 = vadd.f32 0.0, %v305
      %v307 = vpop.f32.mrb[0].mxu0
      %308 = vmatprep.mubr.f32.mxu0 0.0
      %309 = vmatmul.mubr.f32.gmra.mrb[0].mxu0 %v231
      %v310 = vpop.f32.mrb[0].mxu0
      %v311 = vadd.f32 0.0, %v310
      %v312 = vpop.f32.mrb[0].mxu0
      %313 = vdwg.mxu0
      %v314 = vsel %vm222, %v306, -1e+30
      %v315 = vsel %vm223, %v311, -1e+30
      %vm316 = vcmask 130048
      %v317 = vsel %vm316, %v314, -inf
      %318 = vmax.xlane.f32.xlu0 %v317
      %v319 = vpop.xlane.xlu0 %318
      %v320 = vsel %vm316, %v315, -inf
      %321 = vmax.xlane.f32.xlu0 %v320
      %v322 = vpop.xlane.xlu0 %321
      %v323 = vsub.f32 %v314, %v319
      %v324 = vsub.f32 %v315, %v322
      %v325 = vmul.f32 %v323, 1.442695
      %v326 = vpow.pop %v325
      %v327 = vmul.f32 %v324, 1.442695
      %v328 = vpow.pop %v327
      %v329 = vsel %vm316, %v326, 0.0
      %330 = vadd.xlane.f32.xlu0 %v329
      %v331 = vpop.xlane.xlu0 %330
      %v332 = vsel %vm316, %v328, 0.0
      %333 = vadd.xlane.f32.xlu0 %v332
      %v334 = vpop.xlane.xlu0 %333
      %v336 = vsel %vm316, %v326, 0
      %v339 = vsel %vm316, %v328, 0
      %341 = vmatprep.subr.mxu0 0.0
      %342 = vmatpush1.msra.mxu0 %v215
      %343 = vmatprep.subr.mxu0 0.0
      %344 = vmatpush1.msra.mxu0 %v216
      %345 = vmatprep.subr.mxu0 0.0
      %346 = vmatpush1.msra.mxu0 0.0
      %347 = vmatprep.subr.mxu0 0.0
      %348 = vmatpush1.msra.mxu0 0.0
      %349 = vmatprep.subr.mxu0 0.0
      %350 = vmatpush1.msra.mxu0 0.0
      %351 = vmatprep.subr.mxu0 0.0
      %352 = vmatpush1.msra.mxu0 0.0
      %353 = vmatprep.subr.mxu0 0.0
      %354 = vmatpush1.msra.mxu0 0.0
      %355 = vmatprep.subr.mxu0 0.0
      %356 = vmatpush1.msra.mxu0 0.0
      %357 = vmatprep.subr.mxu0 0.0
      %358 = vmatpush1.msra.mxu0 0.0
      %359 = vmatprep.subr.mxu0 0.0
      %360 = vmatpush1.msra.mxu0 0.0
      %361 = vmatprep.subr.mxu0 0.0
      %362 = vmatpush1.msra.mxu0 0.0
      %363 = vmatprep.subr.mxu0 0.0
      %364 = vmatpush1.msra.mxu0 0.0
      %365 = vmatprep.subr.mxu0 0.0
      %366 = vmatpush1.msra.mxu0 0.0
      %367 = vmatprep.subr.mxu0 0.0
      %368 = vmatpush1.msra.mxu0 0.0
      %369 = vmatprep.subr.mxu0 0.0
      %370 = vmatpush1.msra.mxu0 0.0
      %371 = vmatprep.subr.mxu0 0.0
      %372 = vmatpush1.msra.mxu0 0.0
      %373 = vmatprep.subr.mxu0 0.0
      %374 = vmatpush1.msra.mxu0 0.0
      %375 = vmatprep.subr.mxu0 0.0
      %376 = vmatpush1.msra.mxu0 0.0
      %377 = vmatprep.subr.mxu0 0.0
      %378 = vmatpush1.msra.mxu0 0.0
      %379 = vmatprep.subr.mxu0 0.0
      %380 = vmatpush1.msra.mxu0 0.0
      %381 = vmatprep.subr.mxu0 0.0
      %382 = vmatpush1.msra.mxu0 0.0
      %383 = vmatprep.subr.mxu0 0.0
      %384 = vmatpush1.msra.mxu0 0.0
      %385 = vmatprep.subr.mxu0 0.0
      %386 = vmatpush1.msra.mxu0 0.0
      %387 = vmatprep.subr.mxu0 0.0
      %388 = vmatpush1.msra.mxu0 0.0
      %389 = vmatprep.subr.mxu0 0.0
      %390 = vmatpush1.msra.mxu0 0.0
      %391 = vmatprep.subr.mxu0 0.0
      %392 = vmatpush1.msra.mxu0 0.0
      %393 = vmatprep.subr.mxu0 0.0
      %394 = vmatpush1.msra.mxu0 0.0
      %395 = vmatprep.subr.mxu0 0.0
      %396 = vmatpush1.msra.mxu0 0.0
      %397 = vmatprep.subr.mxu0 0.0
      %398 = vmatpush1.msra.mxu0 0.0
      %399 = vmatprep.subr.mxu0 0.0
      %400 = vmatpush1.msra.mxu0 0.0
      %401 = vmatprep.subr.mxu0 0.0
      %402 = vmatpush1.msra.mxu0 0.0
      %403 = vmatprep.subr.mxu0 0.0
      %404 = vmatpush1.msra.mxu0 0.0
      %405 = vmatprep.mubr.f32.mxu0 0.0
      %406 = vmatmul.mubr.f32.gmra.mrb[0].mxu0 %v336
      %v407 = vpop.f32.mrb[0].mxu0
      %v408 = vadd.f32 0.0, %v407
      %v409 = vpop.f32.mrb[0].mxu0
      %410 = vmatprep.mubr.f32.mxu0 0.0
      %411 = vmatmul.mubr.f32.gmra.mrb[0].mxu0 %v339
      %v412 = vpop.f32.mrb[0].mxu0
      %v413 = vadd.f32 0.0, %v412
      %v414 = vpop.f32.mrb[0].mxu0
      %415 = vdwg.mxu0
      %v416 = vrcp.pop %v331
      %v417 = vrcp.pop %v334
      %v418 = vmul.f32 %v408, %v416
      %v419 = vmul.f32 %v413, %v417
      %420 = vrot.lane.b32.xlu0 %v224, 120
      %v421 = vpop.permute.xlu0 %420
      %422 = vrot.lane.b32.xlu0 %v225, 120
      %v423 = vpop.permute.xlu0 %422
      %424 = vrot.lane.b32.xlu0 %v213, 120
      %v425 = vpop.permute.xlu0 %424
      %426 = vrot.lane.b32.xlu0 %v214, 120
      %v427 = vpop.permute.xlu0 %426
      %v428 = vsel %vm226, %v421, 0
      %v430 = vsel %vm226, %v423, 0
      %v432 = vsel %vm226, %v425, 0
      %v434 = vsel %vm226, %v427, 0
      %436 = vmatprep.subr.mxu0 0.0
      %437 = vmatpush1.xpose.msra.mxu0 %v432
      %438 = vmatprep.subr.mxu0 0.0
      %439 = vmatpush1.xpose.msra.mxu0 %v434
      %440 = vmatprep.subr.mxu0 0.0
      %441 = vmatpush1.xpose.msra.mxu0 0.0
      %442 = vmatprep.subr.mxu0 0.0
      %443 = vmatpush1.xpose.msra.mxu0 0.0
      %444 = vmatprep.subr.mxu0 0.0
      %445 = vmatpush1.xpose.msra.mxu0 0.0
      %446 = vmatprep.subr.mxu0 0.0
      %447 = vmatpush1.xpose.msra.mxu0 0.0
      %448 = vmatprep.subr.mxu0 0.0
      %449 = vmatpush1.xpose.msra.mxu0 0.0
      %450 = vmatprep.subr.mxu0 0.0
      %451 = vmatpush1.xpose.msra.mxu0 0.0
      %452 = vmatprep.subr.mxu0 0.0
      %453 = vmatpush1.xpose.msra.mxu0 0.0
      %454 = vmatprep.subr.mxu0 0.0
      %455 = vmatpush1.xpose.msra.mxu0 0.0
      %456 = vmatprep.subr.mxu0 0.0
      %457 = vmatpush1.xpose.msra.mxu0 0.0
      %458 = vmatprep.subr.mxu0 0.0
      %459 = vmatpush1.xpose.msra.mxu0 0.0
      %460 = vmatprep.subr.mxu0 0.0
      %461 = vmatpush1.xpose.msra.mxu0 0.0
      %462 = vmatprep.subr.mxu0 0.0
      %463 = vmatpush1.xpose.msra.mxu0 0.0
      %464 = vmatprep.subr.mxu0 0.0
      %465 = vmatpush1.xpose.msra.mxu0 0.0
      %466 = vmatprep.subr.mxu0 0.0
      %467 = vmatpush1.xpose.msra.mxu0 0.0
      %468 = vmatprep.subr.mxu0 0.0
      %469 = vmatpush1.xpose.msra.mxu0 0.0
      %470 = vmatprep.subr.mxu0 0.0
      %471 = vmatpush1.xpose.msra.mxu0 0.0
      %472 = vmatprep.subr.mxu0 0.0
      %473 = vmatpush1.xpose.msra.mxu0 0.0
      %474 = vmatprep.subr.mxu0 0.0
      %475 = vmatpush1.xpose.msra.mxu0 0.0
      %476 = vmatprep.subr.mxu0 0.0
      %477 = vmatpush1.xpose.msra.mxu0 0.0
      %478 = vmatprep.subr.mxu0 0.0
      %479 = vmatpush1.xpose.msra.mxu0 0.0
      %480 = vmatprep.subr.mxu0 0.0
      %481 = vmatpush1.xpose.msra.mxu0 0.0
      %482 = vmatprep.subr.mxu0 0.0
      %483 = vmatpush1.xpose.msra.mxu0 0.0
      %484 = vmatprep.subr.mxu0 0.0
      %485 = vmatpush1.xpose.msra.mxu0 0.0
      %486 = vmatprep.subr.mxu0 0.0
      %487 = vmatpush1.xpose.msra.mxu0 0.0
      %488 = vmatprep.subr.mxu0 0.0
      %489 = vmatpush1.xpose.msra.mxu0 0.0
      %490 = vmatprep.subr.mxu0 0.0
      %491 = vmatpush1.xpose.msra.mxu0 0.0
      %492 = vmatprep.subr.mxu0 0.0
      %493 = vmatpush1.xpose.msra.mxu0 0.0
      %494 = vmatprep.subr.mxu0 0.0
      %495 = vmatpush1.xpose.msra.mxu0 0.0
      %496 = vmatprep.subr.mxu0 0.0
      %497 = vmatpush1.xpose.msra.mxu0 0.0
      %498 = vmatprep.subr.mxu0 0.0
      %499 = vmatpush1.xpose.msra.mxu0 0.0
      %500 = vmatprep.mubr.f32.mxu0 0.0
      %501 = vmatmul.mubr.f32.gmra.mrb[0].mxu0 %v428
      %v502 = vpop.f32.mrb[0].mxu0
      %v503 = vadd.f32 0.0, %v502
      %v504 = vpop.f32.mrb[0].mxu0
      %505 = vmatprep.mubr.f32.mxu0 0.0
      %506 = vmatmul.mubr.f32.gmra.mrb[0].mxu0 %v430
      %v507 = vpop.f32.mrb[0].mxu0
      %v508 = vadd.f32 0.0, %v507
      %v509 = vpop.f32.mrb[0].mxu0
      %510 = vdwg.mxu0
      %v511 = vsel %vm222, %v503, -1e+30
      %v512 = vsel %vm223, %v508, -1e+30
      %v513 = vsel %vm316, %v511, -inf
      %514 = vmax.xlane.f32.xlu0 %v513
      %v515 = vpop.xlane.xlu0 %514
      %v516 = vsel %vm316, %v512, -inf
      %517 = vmax.xlane.f32.xlu0 %v516
      %v518 = vpop.xlane.xlu0 %517
      %v519 = vsub.f32 %v511, %v515
      %v520 = vsub.f32 %v512, %v518
      %v521 = vmul.f32 %v519, 1.442695
      %v522 = vpow.pop %v521
      %v523 = vmul.f32 %v520, 1.442695
      %v524 = vpow.pop %v523
      %v525 = vsel %vm316, %v522, 0.0
      %526 = vadd.xlane.f32.xlu0 %v525
      %v527 = vpop.xlane.xlu0 %526
      %v528 = vsel %vm316, %v524, 0.0
      %529 = vadd.xlane.f32.xlu0 %v528
      %v530 = vpop.xlane.xlu0 %529
      %533 = vrot.lane.b32.xlu0 %v215, 120
      %v534 = vpop.permute.xlu0 %533
      %535 = vrot.lane.b32.xlu0 %v216, 120
      %v536 = vpop.permute.xlu0 %535
      %v540 = vsel %vm316, %v522, 0
      %v543 = vsel %vm316, %v524, 0
      %545 = vmatprep.subr.mxu0 0.0
      %546 = vmatpush1.msra.mxu0 %v534
      %547 = vmatprep.subr.mxu0 0.0
      %548 = vmatpush1.msra.mxu0 %v536
      %549 = vmatprep.subr.mxu0 0.0
      %550 = vmatpush1.msra.mxu0 0.0
      %551 = vmatprep.subr.mxu0 0.0
      %552 = vmatpush1.msra.mxu0 0.0
      %553 = vmatprep.subr.mxu0 0.0
      %554 = vmatpush1.msra.mxu0 0.0
      %555 = vmatprep.subr.mxu0 0.0
      %556 = vmatpush1.msra.mxu0 0.0
      %557 = vmatprep.subr.mxu0 0.0
      %558 = vmatpush1.msra.mxu0 0.0
      %559 = vmatprep.subr.mxu0 0.0
      %560 = vmatpush1.msra.mxu0 0.0
      %561 = vmatprep.subr.mxu0 0.0
      %562 = vmatpush1.msra.mxu0 0.0
      %563 = vmatprep.subr.mxu0 0.0
      %564 = vmatpush1.msra.mxu0 0.0
      %565 = vmatprep.subr.mxu0 0.0
      %566 = vmatpush1.msra.mxu0 0.0
      %567 = vmatprep.subr.mxu0 0.0
      %568 = vmatpush1.msra.mxu0 0.0
      %569 = vmatprep.subr.mxu0 0.0
      %570 = vmatpush1.msra.mxu0 0.0
      %571 = vmatprep.subr.mxu0 0.0
      %572 = vmatpush1.msra.mxu0 0.0
      %573 = vmatprep.subr.mxu0 0.0
      %574 = vmatpush1.msra.mxu0 0.0
      %575 = vmatprep.subr.mxu0 0.0
      %576 = vmatpush1.msra.mxu0 0.0
      %577 = vmatprep.subr.mxu0 0.0
      %578 = vmatpush1.msra.mxu0 0.0
      %579 = vmatprep.subr.mxu0 0.0
      %580 = vmatpush1.msra.mxu0 0.0
      %581 = vmatprep.subr.mxu0 0.0
      %582 = vmatpush1.msra.mxu0 0.0
      %583 = vmatprep.subr.mxu0 0.0
      %584 = vmatpush1.msra.mxu0 0.0
      %585 = vmatprep.subr.mxu0 0.0
      %586 = vmatpush1.msra.mxu0 0.0
      %587 = vmatprep.subr.mxu0 0.0
      %588 = vmatpush1.msra.mxu0 0.0
      %589 = vmatprep.subr.mxu0 0.0
      %590 = vmatpush1.msra.mxu0 0.0
      %591 = vmatprep.subr.mxu0 0.0
      %592 = vmatpush1.msra.mxu0 0.0
      %593 = vmatprep.subr.mxu0 0.0
      %594 = vmatpush1.msra.mxu0 0.0
      %595 = vmatprep.subr.mxu0 0.0
      %596 = vmatpush1.msra.mxu0 0.0
      %597 = vmatprep.subr.mxu0 0.0
      %598 = vmatpush1.msra.mxu0 0.0
      %599 = vmatprep.subr.mxu0 0.0
      %600 = vmatpush1.msra.mxu0 0.0
      %601 = vmatprep.subr.mxu0 0.0
      %602 = vmatpush1.msra.mxu0 0.0
      %603 = vmatprep.subr.mxu0 0.0
      %604 = vmatpush1.msra.mxu0 0.0
      %605 = vmatprep.subr.mxu0 0.0
      %606 = vmatpush1.msra.mxu0 0.0
      %607 = vmatprep.subr.mxu0 0.0
      %608 = vmatpush1.msra.mxu0 0.0
      %609 = vmatprep.mubr.f32.mxu0 0.0
      %610 = vmatmul.mubr.f32.gmra.mrb[0].mxu0 %v540
      %v611 = vpop.f32.mrb[0].mxu0
      %v612 = vadd.f32 0.0, %v611
      %v613 = vpop.f32.mrb[0].mxu0
      %614 = vmatprep.mubr.f32.mxu0 0.0
      %615 = vmatmul.mubr.f32.gmra.mrb[0].mxu0 %v543
      %v616 = vpop.f32.mrb[0].mxu0
      %v617 = vadd.f32 0.0, %v616
      %v618 = vpop.f32.mrb[0].mxu0
      %619 = vdwg.mxu0
      %v620 = vrcp.pop %v527
      %v621 = vrcp.pop %v530
      %v622 = vmul.f32 %v612, %v620
      %v623 = vmul.f32 %v617, %v621
      %624 = vrot.lane.b32.xlu0 %v224, 112
      %v625 = vpop.permute.xlu0 %624
      %626 = vrot.lane.b32.xlu0 %v225, 112
      %v627 = vpop.permute.xlu0 %626
      %628 = vrot.lane.b32.xlu0 %v213, 112
      %v629 = vpop.permute.xlu0 %628
      %630 = vrot.lane.b32.xlu0 %v214, 112
      %v631 = vpop.permute.xlu0 %630
      %v632 = vsel %vm226, %v625, 0
      %v634 = vsel %vm226, %v627, 0
      %v636 = vsel %vm226, %v629, 0
      %v638 = vsel %vm226, %v631, 0
      %640 = vmatprep.subr.mxu0 0.0
      %641 = vmatpush1.xpose.msra.mxu0 %v636
      %642 = vmatprep.subr.mxu0 0.0
      %643 = vmatpush1.xpose.msra.mxu0 %v638
      %644 = vmatprep.subr.mxu0 0.0
      %645 = vmatpush1.xpose.msra.mxu0 0.0
      %646 = vmatprep.subr.mxu0 0.0
      %647 = vmatpush1.xpose.msra.mxu0 0.0
      %648 = vmatprep.subr.mxu0 0.0
      %649 = vmatpush1.xpose.msra.mxu0 0.0
      %650 = vmatprep.subr.mxu0 0.0
      %651 = vmatpush1.xpose.msra.mxu0 0.0
      %652 = vmatprep.subr.mxu0 0.0
      %653 = vmatpush1.xpose.msra.mxu0 0.0
      %654 = vmatprep.subr.mxu0 0.0
      %655 = vmatpush1.xpose.msra.mxu0 0.0
      %656 = vmatprep.subr.mxu0 0.0
      %657 = vmatpush1.xpose.msra.mxu0 0.0
      %658 = vmatprep.subr.mxu0 0.0
      %659 = vmatpush1.xpose.msra.mxu0 0.0
      %660 = vmatprep.subr.mxu0 0.0
      %661 = vmatpush1.xpose.msra.mxu0 0.0
      %662 = vmatprep.subr.mxu0 0.0
      %663 = vmatpush1.xpose.msra.mxu0 0.0
      %664 = vmatprep.subr.mxu0 0.0
      %665 = vmatpush1.xpose.msra.mxu0 0.0
      %666 = vmatprep.subr.mxu0 0.0
      %667 = vmatpush1.xpose.msra.mxu0 0.0
      %668 = vmatprep.subr.mxu0 0.0
      %669 = vmatpush1.xpose.msra.mxu0 0.0
      %670 = vmatprep.subr.mxu0 0.0
      %671 = vmatpush1.xpose.msra.mxu0 0.0
      %672 = vmatprep.subr.mxu0 0.0
      %673 = vmatpush1.xpose.msra.mxu0 0.0
      %674 = vmatprep.subr.mxu0 0.0
      %675 = vmatpush1.xpose.msra.mxu0 0.0
      %676 = vmatprep.subr.mxu0 0.0
      %677 = vmatpush1.xpose.msra.mxu0 0.0
      %678 = vmatprep.subr.mxu0 0.0
      %679 = vmatpush1.xpose.msra.mxu0 0.0
      %680 = vmatprep.subr.mxu0 0.0
      %681 = vmatpush1.xpose.msra.mxu0 0.0
      %682 = vmatprep.subr.mxu0 0.0
      %683 = vmatpush1.xpose.msra.mxu0 0.0
      %684 = vmatprep.subr.mxu0 0.0
      %685 = vmatpush1.xpose.msra.mxu0 0.0
      %686 = vmatprep.subr.mxu0 0.0
      %687 = vmatpush1.xpose.msra.mxu0 0.0
      %688 = vmatprep.subr.mxu0 0.0
      %689 = vmatpush1.xpose.msra.mxu0 0.0
      %690 = vmatprep.subr.mxu0 0.0
      %691 = vmatpush1.xpose.msra.mxu0 0.0
      %692 = vmatprep.subr.mxu0 0.0
      %693 = vmatpush1.xpose.msra.mxu0 0.0
      %694 = vmatprep.subr.mxu0 0.0
      %695 = vmatpush1.xpose.msra.mxu0 0.0
      %696 = vmatprep.subr.mxu0 0.0
      %697 = vmatpush1.xpose.msra.mxu0 0.0
      %698 = vmatprep.subr.mxu0 0.0
      %699 = vmatpush1.xpose.msra.mxu0 0.0
      %700 = vmatprep.subr.mxu0 0.0
      %701 = vmatpush1.xpose.msra.mxu0 0.0
      %702 = vmatprep.subr.mxu0 0.0
      %703 = vmatpush1.xpose.msra.mxu0 0.0
      %704 = vmatprep.mubr.f32.mxu0 0.0
      %705 = vmatmul.mubr.f32.gmra.mrb[0].mxu0 %v632
      %v706 = vpop.f32.mrb[0].mxu0
      %v707 = vadd.f32 0.0, %v706
      %v708 = vpop.f32.mrb[0].mxu0
      %709 = vmatprep.mubr.f32.mxu0 0.0
      %710 = vmatmul.mubr.f32.gmra.mrb[0].mxu0 %v634
      %v711 = vpop.f32.mrb[0].mxu0
      %v712 = vadd.f32 0.0, %v711
      %v713 = vpop.f32.mrb[0].mxu0
      %714 = vdwg.mxu0
      %v715 = vsel %vm222, %v707, -1e+30
      %v716 = vsel %vm223, %v712, -1e+30
      %v717 = vsel %vm316, %v715, -inf
      %718 = vmax.xlane.f32.xlu0 %v717
      %v719 = vpop.xlane.xlu0 %718
      %v720 = vsel %vm316, %v716, -inf
      %721 = vmax.xlane.f32.xlu0 %v720
      %v722 = vpop.xlane.xlu0 %721
      %v723 = vsub.f32 %v715, %v719
      %v724 = vsub.f32 %v716, %v722
      %v725 = vmul.f32 %v723, 1.442695
      %v726 = vpow.pop %v725
      %v727 = vmul.f32 %v724, 1.442695
      %v728 = vpow.pop %v727
      %v729 = vsel %vm316, %v726, 0.0
      %730 = vadd.xlane.f32.xlu0 %v729
      %v731 = vpop.xlane.xlu0 %730
      %v732 = vsel %vm316, %v728, 0.0
      %733 = vadd.xlane.f32.xlu0 %v732
      %v734 = vpop.xlane.xlu0 %733
      %735 = vrot.lane.b32.xlu0 %v215, 112
      %v736 = vpop.permute.xlu0 %735
      %737 = vrot.lane.b32.xlu0 %v216, 112
      %v738 = vpop.permute.xlu0 %737
      %v742 = vsel %vm316, %v726, 0
      %v745 = vsel %vm316, %v728, 0
      %747 = vmatprep.subr.mxu0 0.0
      %748 = vmatpush1.msra.mxu0 %v736
      %749 = vmatprep.subr.mxu0 0.0
      %750 = vmatpush1.msra.mxu0 %v738
      %751 = vmatprep.subr.mxu0 0.0
      %752 = vmatpush1.msra.mxu0 0.0
      %753 = vmatprep.subr.mxu0 0.0
      %754 = vmatpush1.msra.mxu0 0.0
      %755 = vmatprep.subr.mxu0 0.0
      %756 = vmatpush1.msra.mxu0 0.0
      %757 = vmatprep.subr.mxu0 0.0
      %758 = vmatpush1.msra.mxu0 0.0
      %759 = vmatprep.subr.mxu0 0.0
      %760 = vmatpush1.msra.mxu0 0.0
      %761 = vmatprep.subr.mxu0 0.0
      %762 = vmatpush1.msra.mxu0 0.0
      %763 = vmatprep.subr.mxu0 0.0
      %764 = vmatpush1.msra.mxu0 0.0
      %765 = vmatprep.subr.mxu0 0.0
      %766 = vmatpush1.msra.mxu0 0.0
      %767 = vmatprep.subr.mxu0 0.0
      %768 = vmatpush1.msra.mxu0 0.0
      %769 = vmatprep.subr.mxu0 0.0
      %770 = vmatpush1.msra.mxu0 0.0
      %771 = vmatprep.subr.mxu0 0.0
      %772 = vmatpush1.msra.mxu0 0.0
      %773 = vmatprep.subr.mxu0 0.0
      %774 = vmatpush1.msra.mxu0 0.0
      %775 = vmatprep.subr.mxu0 0.0
      %776 = vmatpush1.msra.mxu0 0.0
      %777 = vmatprep.subr.mxu0 0.0
      %778 = vmatpush1.msra.mxu0 0.0
      %779 = vmatprep.subr.mxu0 0.0
      %780 = vmatpush1.msra.mxu0 0.0
      %781 = vmatprep.subr.mxu0 0.0
      %782 = vmatpush1.msra.mxu0 0.0
      %783 = vmatprep.subr.mxu0 0.0
      %784 = vmatpush1.msra.mxu0 0.0
      %785 = vmatprep.subr.mxu0 0.0
      %786 = vmatpush1.msra.mxu0 0.0
      %787 = vmatprep.subr.mxu0 0.0
      %788 = vmatpush1.msra.mxu0 0.0
      %789 = vmatprep.subr.mxu0 0.0
      %790 = vmatpush1.msra.mxu0 0.0
      %791 = vmatprep.subr.mxu0 0.0
      %792 = vmatpush1.msra.mxu0 0.0
      %793 = vmatprep.subr.mxu0 0.0
      %794 = vmatpush1.msra.mxu0 0.0
      %795 = vmatprep.subr.mxu0 0.0
      %796 = vmatpush1.msra.mxu0 0.0
      %797 = vmatprep.subr.mxu0 0.0
      %798 = vmatpush1.msra.mxu0 0.0
      %799 = vmatprep.subr.mxu0 0.0
      %800 = vmatpush1.msra.mxu0 0.0
      %801 = vmatprep.subr.mxu0 0.0
      %802 = vmatpush1.msra.mxu0 0.0
      %803 = vmatprep.subr.mxu0 0.0
      %804 = vmatpush1.msra.mxu0 0.0
      %805 = vmatprep.subr.mxu0 0.0
      %806 = vmatpush1.msra.mxu0 0.0
      %807 = vmatprep.subr.mxu0 0.0
      %808 = vmatpush1.msra.mxu0 0.0
      %809 = vmatprep.subr.mxu0 0.0
      %810 = vmatpush1.msra.mxu0 0.0
      %811 = vmatprep.mubr.f32.mxu0 0.0
      %812 = vmatmul.mubr.f32.gmra.mrb[0].mxu0 %v742
      %v813 = vpop.f32.mrb[0].mxu0
      %v814 = vadd.f32 0.0, %v813
      %v815 = vpop.f32.mrb[0].mxu0
      %816 = vmatprep.mubr.f32.mxu0 0.0
      %817 = vmatmul.mubr.f32.gmra.mrb[0].mxu0 %v745
      %v818 = vpop.f32.mrb[0].mxu0
      %v819 = vadd.f32 0.0, %v818
      %v820 = vpop.f32.mrb[0].mxu0
      %821 = vdwg.mxu0
      %v822 = vrcp.pop %v731
      %v823 = vrcp.pop %v734
      %v824 = vmul.f32 %v814, %v822
      %v825 = vmul.f32 %v819, %v823
      %826 = vrot.lane.b32.xlu0 %v224, 104
      %v827 = vpop.permute.xlu0 %826
      %828 = vrot.lane.b32.xlu0 %v225, 104
      %v829 = vpop.permute.xlu0 %828
      %830 = vrot.lane.b32.xlu0 %v213, 104
      %v831 = vpop.permute.xlu0 %830
      %832 = vrot.lane.b32.xlu0 %v214, 104
      %v833 = vpop.permute.xlu0 %832
      %v834 = vsel %vm226, %v827, 0
      %v836 = vsel %vm226, %v829, 0
      %v838 = vsel %vm226, %v831, 0
      %v840 = vsel %vm226, %v833, 0
      %842 = vmatprep.subr.mxu0 0.0
      %843 = vmatpush1.xpose.msra.mxu0 %v838
      %844 = vmatprep.subr.mxu0 0.0
      %845 = vmatpush1.xpose.msra.mxu0 %v840
      %846 = vmatprep.subr.mxu0 0.0
      %847 = vmatpush1.xpose.msra.mxu0 0.0
      %848 = vmatprep.subr.mxu0 0.0
      %849 = vmatpush1.xpose.msra.mxu0 0.0
      %850 = vmatprep.subr.mxu0 0.0
      %851 = vmatpush1.xpose.msra.mxu0 0.0
      %852 = vmatprep.subr.mxu0 0.0
      %853 = vmatpush1.xpose.msra.mxu0 0.0
      %854 = vmatprep.subr.mxu0 0.0
      %855 = vmatpush1.xpose.msra.mxu0 0.0
      %856 = vmatprep.subr.mxu0 0.0
      %857 = vmatpush1.xpose.msra.mxu0 0.0
      %858 = vmatprep.subr.mxu0 0.0
      %859 = vmatpush1.xpose.msra.mxu0 0.0
      %860 = vmatprep.subr.mxu0 0.0
      %861 = vmatpush1.xpose.msra.mxu0 0.0
      %862 = vmatprep.subr.mxu0 0.0
      %863 = vmatpush1.xpose.msra.mxu0 0.0
      %864 = vmatprep.subr.mxu0 0.0
      %865 = vmatpush1.xpose.msra.mxu0 0.0
      %866 = vmatprep.subr.mxu0 0.0
      %867 = vmatpush1.xpose.msra.mxu0 0.0
      %868 = vmatprep.subr.mxu0 0.0
      %869 = vmatpush1.xpose.msra.mxu0 0.0
      %870 = vmatprep.subr.mxu0 0.0
      %871 = vmatpush1.xpose.msra.mxu0 0.0
      %872 = vmatprep.subr.mxu0 0.0
      %873 = vmatpush1.xpose.msra.mxu0 0.0
      %874 = vmatprep.subr.mxu0 0.0
      %875 = vmatpush1.xpose.msra.mxu0 0.0
      %876 = vmatprep.subr.mxu0 0.0
      %877 = vmatpush1.xpose.msra.mxu0 0.0
      %878 = vmatprep.subr.mxu0 0.0
      %879 = vmatpush1.xpose.msra.mxu0 0.0
      %880 = vmatprep.subr.mxu0 0.0
      %881 = vmatpush1.xpose.msra.mxu0 0.0
      %882 = vmatprep.subr.mxu0 0.0
      %883 = vmatpush1.xpose.msra.mxu0 0.0
      %884 = vmatprep.subr.mxu0 0.0
      %885 = vmatpush1.xpose.msra.mxu0 0.0
      %886 = vmatprep.subr.mxu0 0.0
      %887 = vmatpush1.xpose.msra.mxu0 0.0
      %888 = vmatprep.subr.mxu0 0.0
      %889 = vmatpush1.xpose.msra.mxu0 0.0
      %890 = vmatprep.subr.mxu0 0.0
      %891 = vmatpush1.xpose.msra.mxu0 0.0
      %892 = vmatprep.subr.mxu0 0.0
      %893 = vmatpush1.xpose.msra.mxu0 0.0
      %894 = vmatprep.subr.mxu0 0.0
      %895 = vmatpush1.xpose.msra.mxu0 0.0
      %896 = vmatprep.subr.mxu0 0.0
      %897 = vmatpush1.xpose.msra.mxu0 0.0
      %898 = vmatprep.subr.mxu0 0.0
      %899 = vmatpush1.xpose.msra.mxu0 0.0
      %900 = vmatprep.subr.mxu0 0.0
      %901 = vmatpush1.xpose.msra.mxu0 0.0
      %902 = vmatprep.subr.mxu0 0.0
      %903 = vmatpush1.xpose.msra.mxu0 0.0
      %904 = vmatprep.subr.mxu0 0.0
      %905 = vmatpush1.xpose.msra.mxu0 0.0
      %906 = vmatprep.mubr.f32.mxu0 0.0
      %907 = vmatmul.mubr.f32.gmra.mrb[0].mxu0 %v834
      %v908 = vpop.f32.mrb[0].mxu0
      %v909 = vadd.f32 0.0, %v908
      %v910 = vpop.f32.mrb[0].mxu0
      %911 = vmatprep.mubr.f32.mxu0 0.0
      %912 = vmatmul.mubr.f32.gmra.mrb[0].mxu0 %v836
      %v913 = vpop.f32.mrb[0].mxu0
      %v914 = vadd.f32 0.0, %v913
      %v915 = vpop.f32.mrb[0].mxu0
      %916 = vdwg.mxu0
      %v917 = vsel %vm222, %v909, -1e+30
      %v918 = vsel %vm223, %v914, -1e+30
      %v919 = vsel %vm316, %v917, -inf
      %920 = vmax.xlane.f32.xlu0 %v919
      %v921 = vpop.xlane.xlu0 %920
      %v922 = vsel %vm316, %v918, -inf
      %923 = vmax.xlane.f32.xlu0 %v922
      %v924 = vpop.xlane.xlu0 %923
      %v925 = vsub.f32 %v917, %v921
      %v926 = vsub.f32 %v918, %v924
      %v927 = vmul.f32 %v925, 1.442695
      %v928 = vpow.pop %v927
      %v929 = vmul.f32 %v926, 1.442695
      %v930 = vpow.pop %v929
      %v931 = vsel %vm316, %v928, 0.0
      %932 = vadd.xlane.f32.xlu0 %v931
      %v933 = vpop.xlane.xlu0 %932
      %v934 = vsel %vm316, %v930, 0.0
      %935 = vadd.xlane.f32.xlu0 %v934
      %v936 = vpop.xlane.xlu0 %935
      %937 = vrot.lane.b32.xlu0 %v215, 104
      %v938 = vpop.permute.xlu0 %937
      %939 = vrot.lane.b32.xlu0 %v216, 104
      %v940 = vpop.permute.xlu0 %939
      %v944 = vsel %vm316, %v928, 0
      %v947 = vsel %vm316, %v930, 0
      %949 = vmatprep.subr.mxu0 0.0
      %950 = vmatpush1.msra.mxu0 %v938
      %951 = vmatprep.subr.mxu0 0.0
      %952 = vmatpush1.msra.mxu0 %v940
      %953 = vmatprep.subr.mxu0 0.0
      %954 = vmatpush1.msra.mxu0 0.0
      %955 = vmatprep.subr.mxu0 0.0
      %956 = vmatpush1.msra.mxu0 0.0
      %957 = vmatprep.subr.mxu0 0.0
      %958 = vmatpush1.msra.mxu0 0.0
      %959 = vmatprep.subr.mxu0 0.0
      %960 = vmatpush1.msra.mxu0 0.0
      %961 = vmatprep.subr.mxu0 0.0
      %962 = vmatpush1.msra.mxu0 0.0
      %963 = vmatprep.subr.mxu0 0.0
      %964 = vmatpush1.msra.mxu0 0.0
      %965 = vmatprep.subr.mxu0 0.0
      %966 = vmatpush1.msra.mxu0 0.0
      %967 = vmatprep.subr.mxu0 0.0
      %968 = vmatpush1.msra.mxu0 0.0
      %969 = vmatprep.subr.mxu0 0.0
      %970 = vmatpush1.msra.mxu0 0.0
      %971 = vmatprep.subr.mxu0 0.0
      %972 = vmatpush1.msra.mxu0 0.0
      %973 = vmatprep.subr.mxu0 0.0
      %974 = vmatpush1.msra.mxu0 0.0
      %975 = vmatprep.subr.mxu0 0.0
      %976 = vmatpush1.msra.mxu0 0.0
      %977 = vmatprep.subr.mxu0 0.0
      %978 = vmatpush1.msra.mxu0 0.0
      %979 = vmatprep.subr.mxu0 0.0
      %980 = vmatpush1.msra.mxu0 0.0
      %981 = vmatprep.subr.mxu0 0.0
      %982 = vmatpush1.msra.mxu0 0.0
      %983 = vmatprep.subr.mxu0 0.0
      %984 = vmatpush1.msra.mxu0 0.0
      %985 = vmatprep.subr.mxu0 0.0
      %986 = vmatpush1.msra.mxu0 0.0
      %987 = vmatprep.subr.mxu0 0.0
      %988 = vmatpush1.msra.mxu0 0.0
      %989 = vmatprep.subr.mxu0 0.0
      %990 = vmatpush1.msra.mxu0 0.0
      %991 = vmatprep.subr.mxu0 0.0
      %992 = vmatpush1.msra.mxu0 0.0
      %993 = vmatprep.subr.mxu0 0.0
      %994 = vmatpush1.msra.mxu0 0.0
      %995 = vmatprep.subr.mxu0 0.0
      %996 = vmatpush1.msra.mxu0 0.0
      %997 = vmatprep.subr.mxu0 0.0
      %998 = vmatpush1.msra.mxu0 0.0
      %999 = vmatprep.subr.mxu0 0.0
      %1000 = vmatpush1.msra.mxu0 0.0
      %1001 = vmatprep.subr.mxu0 0.0
      %1002 = vmatpush1.msra.mxu0 0.0
      %1003 = vmatprep.subr.mxu0 0.0
      %1004 = vmatpush1.msra.mxu0 0.0
      %1005 = vmatprep.subr.mxu0 0.0
      %1006 = vmatpush1.msra.mxu0 0.0
      %1007 = vmatprep.subr.mxu0 0.0
      %1008 = vmatpush1.msra.mxu0 0.0
      %1009 = vmatprep.subr.mxu0 0.0
      %1010 = vmatpush1.msra.mxu0 0.0
      %1011 = vmatprep.subr.mxu0 0.0
      %1012 = vmatpush1.msra.mxu0 0.0
      %1013 = vmatprep.mubr.f32.mxu0 0.0
      %1014 = vmatmul.mubr.f32.gmra.mrb[0].mxu0 %v944
      %v1015 = vpop.f32.mrb[0].mxu0
      %v1016 = vadd.f32 0.0, %v1015
      %v1017 = vpop.f32.mrb[0].mxu0
      %1018 = vmatprep.mubr.f32.mxu0 0.0
      %1019 = vmatmul.mubr.f32.gmra.mrb[0].mxu0 %v947
      %v1020 = vpop.f32.mrb[0].mxu0
      %v1021 = vadd.f32 0.0, %v1020
      %v1022 = vpop.f32.mrb[0].mxu0
      %1023 = vdwg.mxu0
      %v1024 = vrcp.pop %v933
      %v1025 = vrcp.pop %v936
      %v1026 = vmul.f32 %v1016, %v1024
      %v1027 = vmul.f32 %v1021, %v1025
      %1030 = vrot.lane.b32.xlu0 %v622, 8
      %v1031 = vpop.permute.xlu0 %1030
      %1032 = vrot.lane.b32.xlu0 %v623, 8
      %v1033 = vpop.permute.xlu0 %1032
      %1038 = vrot.lane.b32.xlu0 %v824, 16
      %v1039 = vpop.permute.xlu0 %1038
      %1040 = vrot.lane.b32.xlu0 %v825, 16
      %v1041 = vpop.permute.xlu0 %1040
      %1046 = vrot.lane.b32.xlu0 %v1026, 24
      %v1047 = vpop.permute.xlu0 %1046
      %1048 = vrot.lane.b32.xlu0 %v1027, 24
      %v1049 = vpop.permute.xlu0 %1048
      %v1052 = vsel %vm226, %v418, %v1031
      %v1053 = vsel %vm226, %v419, %v1033
      %v1054 = vsel %vm316, %v1052, %v1039
      %v1055 = vsel %vm316, %v1053, %v1041
      %vm1056 = vcmask 195584
      %v1057 = vsel %vm1056, %v1054, %v1047
      %v1058 = vsel %vm1056, %v1055, %v1049
      %vm1059 = vcmask 261120
      %1060 = vst.msk [vmem:[%s210] sm:$0xff] %vm1059, %v1057
      %1061 = vst.msk [vmem:[%s210 + $0x8] sm:$0xff] %vm1059, %v1058
      %p1062 = scmp.lt.s32.totalorder %s14, 1
      %s1063 = scalar_select %p1062, %s14, 1
      %s1064 = smul.addr %s1063, 2
      %s1065 = smul.addr %s1064, 8
      %s1066 = scalar_lea.vmem %s3, %s1065
      // Predicated region
      $region33: #{_lambda_.17} parent=31 // pred_check
        %p1067 = pneg %p110
      $region34: #{_lambda_.17} parent=31 // pred_check_branch
        %1069 = sbr.rel (%p1067) target = $region36
      $region35: #{_lambda_.17} parent=31 // pred_region
        _
      $region36: #{_lambda_.17} parent=31 // pred_fallthru
        _
    $region32: #{_lambda_.17} parent=5 // pred_fallthru
      _
    %p1070 = scmp.le.s32.totalorder 2, %s9
    // Predicated region
    $region37: #{_lambda_.17} parent=5 // pred_check
      %p1071 = pneg %p1070
    $region38: #{_lambda_.17} parent=5 // pred_check_branch
      %1073 = sbr.rel (%p1071) target = $region40
    $region39: #{_lambda_.17} parent=5 // pred_region
      %s1074 = ssub.s32 %s9, 2
      // Predicated region
      $region41: #{_lambda_.17} parent=39 // pred_check
        %p1075 = pneg %p116
      $region42: #{_lambda_.17} parent=39 // pred_check_branch
        %1077 = sbr.rel (%p1075) target = $region44
      $region43: #{_lambda_.17} parent=39 // pred_region
        %p1078 = scmp.lt.s32.totalorder %s15, 1
        %s1079 = scalar_select %p1078, %s15, 1
        %s1080 = smul.addr %s1079, 2
        %s1081 = smul.addr %s1080, 8
        %s1082 = scalar_lea.vmem %s3, %s1081
      $region44: #{_lambda_.17} parent=39 // pred_fallthru
        _
    $region40: #{_lambda_.17} parent=5 // pred_fallthru
      _
  $region6: #{_lambda_.17} parent=0 // loop_footer
    %s13 = sadd.s32 1, %s9
  $region7: #{_lambda_.17} parent=0 // loop_footer_branch
    %8 = sbr.rel target = $region3
  $region8: #{_lambda_.17} parent=0 // loop_exit
    _

// kernel: _lambda_.20
$region0: #{_lambda_.20}
  #allocation0 [shape = 'u32[]', space=smem, size = 0x4, offset = 0x4, fixed_abs, tag = 'smem constant byte address 0x4 - core index']
  #allocation1 [shape = 'u32[144,128]{1,0:T(1,128)}', space=vmem, size = 0x12000, scoped, tag = 'internal scratch']
  #allocation2 [shape = 'f32[32,64]{1,0:T(8,128)}', space=vmem, size = 0x4000, scoped, tag = 'scratch operand']
  %s0 = inlined_call_operand.vmem [shape: f32[32,32], index: 0, kind: input, shape index: {}]
  %s1 = inlined_call_operand.vmem [shape: f32[32,64], index: 1, kind: input, shape index: {}]
  %s2 = inlined_call_operand.vmem [shape: f32[32,64], index: 2, kind: output, shape index: {}]
  %s3 = sld [smem:[#allocation0]]
  $region26: #{_lambda_.20} parent=0
    _
  %s5 = ssub.s32 1, %s3
  %s6 = scalar_select 0, %s5, %s3
  // Predicated region
  $region2: #{_lambda_.20} parent=0 // pred_check
    _
  $region3: #{_lambda_.20} parent=0 // pred_check_branch
    %8 = sbr.rel (0) target = $region5
  $region4: #{_lambda_.20} parent=0 // pred_region
    _
  $region5: #{_lambda_.20} parent=0 // pred_fallthru
    _
  // Predicated region
  $region6: #{_lambda_.20} parent=0 // pred_check
    _
  $region7: #{_lambda_.20} parent=0 // pred_check_branch
    %10 = sbr.rel (0) target = $region9
  $region8: #{_lambda_.20} parent=0 // pred_region
    _
  $region9: #{_lambda_.20} parent=0 // pred_fallthru
    _
  %p11 = scmp.eq.s32.totalorder 0, 0
  // Predicated region
  $region10: #{_lambda_.20} parent=0 // pred_check
    %p12 = pneg %p11
  $region11: #{_lambda_.20} parent=0 // pred_check_branch
    %14 = sbr.rel (%p12) target = $region13
  $region12: #{_lambda_.20} parent=0 // pred_region
    %vm15 = vcmask 523264
    %16 = vst.msk [vmem:[#allocation2] sm:$0xff] %vm15, 0.0
    %17 = vst.msk [vmem:[#allocation2 + $0x8] sm:$0xff] %vm15, 0.0
    %18 = vst.msk [vmem:[#allocation2 + $0x10] sm:$0xff] %vm15, 0.0
    %19 = vst.msk [vmem:[#allocation2 + $0x18] sm:$0xff] %vm15, 0.0
  $region13: #{_lambda_.20} parent=0 // pred_fallthru
    _
  %v20 = vld [vmem:[#allocation2] sm:$0xff]
  %v21 = vld [vmem:[#allocation2 + $0x8] sm:$0xff]
  %v22 = vld [vmem:[#allocation2 + $0x10] sm:$0xff]
  %v23 = vld [vmem:[#allocation2 + $0x18] sm:$0xff]
  %v24 = vld [vmem:[%s0] sm:$0xff]
  %v25 = vld [vmem:[%s0 + $0x8] sm:$0xff]
  %v26 = vld [vmem:[%s0 + $0x10] sm:$0xff]
  %v27 = vld [vmem:[%s0 + $0x18] sm:$0xff]
  %v28 = vld [vmem:[%s1] sm:$0xff]
  %v29 = vld [vmem:[%s1 + $0x8] sm:$0xff]
  %v30 = vld [vmem:[%s1 + $0x10] sm:$0xff]
  %v31 = vld [vmem:[%s1 + $0x18] sm:$0xff]
  %vm32 = vcmask 261120
  %v34 = vsel %vm32, %v24, 0
  %v37 = vsel %vm32, %v25, 0
  %v40 = vsel %vm32, %v26, 0
  %v43 = vsel %vm32, %v27, 0
  %45 = vmatprep.subr.mxu0 0.0
  %46 = vmatpush1.msra.mxu0 %v28
  %47 = vmatprep.subr.mxu0 0.0
  %48 = vmatpush1.msra.mxu0 %v29
  %49 = vmatprep.subr.mxu0 0.0
  %50 = vmatpush1.msra.mxu0 %v30
  %51 = vmatprep.subr.mxu0 0.0
  %52 = vmatpush1.msra.mxu0 %v31
  %53 = vmatprep.subr.mxu0 0.0
  %54 = vmatpush1.msra.mxu0 0.0
  %55 = vmatprep.subr.mxu0 0.0
  %56 = vmatpush1.msra.mxu0 0.0
  %57 = vmatprep.subr.mxu0 0.0
  %58 = vmatpush1.msra.mxu0 0.0
  %59 = vmatprep.subr.mxu0 0.0
  %60 = vmatpush1.msra.mxu0 0.0
  %61 = vmatprep.subr.mxu0 0.0
  %62 = vmatpush1.msra.mxu0 0.0
  %63 = vmatprep.subr.mxu0 0.0
  %64 = vmatpush1.msra.mxu0 0.0
  %65 = vmatprep.subr.mxu0 0.0
  %66 = vmatpush1.msra.mxu0 0.0
  %67 = vmatprep.subr.mxu0 0.0
  %68 = vmatpush1.msra.mxu0 0.0
  %69 = vmatprep.subr.mxu0 0.0
  %70 = vmatpush1.msra.mxu0 0.0
  %71 = vmatprep.subr.mxu0 0.0
  %72 = vmatpush1.msra.mxu0 0.0
  %73 = vmatprep.subr.mxu0 0.0
  %74 = vmatpush1.msra.mxu0 0.0
  %75 = vmatprep.subr.mxu0 0.0
  %76 = vmatpush1.msra.mxu0 0.0
  %77 = vmatprep.subr.mxu0 0.0
  %78 = vmatpush1.msra.mxu0 0.0
  %79 = vmatprep.subr.mxu0 0.0
  %80 = vmatpush1.msra.mxu0 0.0
  %81 = vmatprep.subr.mxu0 0.0
  %82 = vmatpush1.msra.mxu0 0.0
  %83 = vmatprep.subr.mxu0 0.0
  %84 = vmatpush1.msra.mxu0 0.0
  %85 = vmatprep.subr.mxu0 0.0
  %86 = vmatpush1.msra.mxu0 0.0
  %87 = vmatprep.subr.mxu0 0.0
  %88 = vmatpush1.msra.mxu0 0.0
  %89 = vmatprep.subr.mxu0 0.0
  %90 = vmatpush1.msra.mxu0 0.0
  %91 = vmatprep.subr.mxu0 0.0
  %92 = vmatpush1.msra.mxu0 0.0
  %93 = vmatprep.subr.mxu0 0.0
  %94 = vmatpush1.msra.mxu0 0.0
  %95 = vmatprep.subr.mxu0 0.0
  %96 = vmatpush1.msra.mxu0 0.0
  %97 = vmatprep.subr.mxu0 0.0
  %98 = vmatpush1.msra.mxu0 0.0
  %99 = vmatprep.subr.mxu0 0.0
  %100 = vmatpush1.msra.mxu0 0.0
  %101 = vmatprep.subr.mxu0 0.0
  %102 = vmatpush1.msra.mxu0 0.0
  %103 = vmatprep.subr.mxu0 0.0
  %104 = vmatpush1.msra.mxu0 0.0
  %105 = vmatprep.subr.mxu0 0.0
  %106 = vmatpush1.msra.mxu0 0.0
  %107 = vmatprep.subr.mxu0 0.0
  %108 = vmatpush1.msra.mxu0 0.0
  %109 = vmatprep.mubr.f32.mxu0 0.0
  %110 = vmatmul.mubr.f32.gmra.mrb[0].mxu0 %v34
  %v111 = vpop.f32.mrb[0].mxu0
  %v112 = vadd.f32 0.0, %v111
  %v113 = vpop.f32.mrb[0].mxu0
  %114 = vmatprep.mubr.f32.mxu0 0.0
  %115 = vmatmul.mubr.f32.gmra.mrb[0].mxu0 %v37
  %v116 = vpop.f32.mrb[0].mxu0
  %v117 = vadd.f32 0.0, %v116
  %v118 = vpop.f32.mrb[0].mxu0
  %119 = vmatprep.mubr.f32.mxu0 0.0
  %120 = vmatmul.mubr.f32.gmra.mrb[0].mxu0 %v40
  %v121 = vpop.f32.mrb[0].mxu0
  %v122 = vadd.f32 0.0, %v121
  %v123 = vpop.f32.mrb[0].mxu0
  %124 = vmatprep.mubr.f32.mxu0 0.0
  %125 = vmatmul.mubr.f32.gmra.mrb[0].mxu0 %v43
  %v126 = vpop.f32.mrb[0].mxu0
  %v127 = vadd.f32 0.0, %v126
  %v128 = vpop.f32.mrb[0].mxu0
  %129 = vdwg.mxu0
  %v130 = vadd.f32 %v20, %v112
  %v131 = vadd.f32 %v21, %v117
  %v132 = vadd.f32 %v22, %v122
  %v133 = vadd.f32 %v23, %v127
  %vm134 = vcmask 523264
  %135 = vst.msk [vmem:[#allocation2] sm:$0xff] %vm134, %v130
  %136 = vst.msk [vmem:[#allocation2 + $0x8] sm:$0xff] %vm134, %v131
  %137 = vst.msk [vmem:[#allocation2 + $0x10] sm:$0xff] %vm134, %v132
  %138 = vst.msk [vmem:[#allocation2 + $0x18] sm:$0xff] %vm134, %v133
  // Predicated region
  $region14: #{_lambda_.20} parent=0 // pred_check
    %p139 = pneg %p11
  $region15: #{_lambda_.20} parent=0 // pred_check_branch
    %141 = sbr.rel (%p139) target = $region17
  $region16: #{_lambda_.20} parent=0 // pred_region
    %v142 = vld [vmem:[#allocation2] sm:$0xff]
    %v143 = vld [vmem:[#allocation2 + $0x8] sm:$0xff]
    %v144 = vld [vmem:[#allocation2 + $0x10] sm:$0xff]
    %v145 = vld [vmem:[#allocation2 + $0x18] sm:$0xff]
    %146 = vst.msk [vmem:[%s2] sm:$0xff] %vm134, %v142
    %147 = vst.msk [vmem:[%s2 + $0x8] sm:$0xff] %vm134, %v143
    %148 = vst.msk [vmem:[%s2 + $0x10] sm:$0xff] %vm134, %v144
    %149 = vst.msk [vmem:[%s2 + $0x18] sm:$0xff] %vm134, %v145
  $region17: #{_lambda_.20} parent=0 // pred_fallthru
    _
  // Predicated region
  $region18: #{_lambda_.20} parent=0 // pred_check
    _
  $region19: #{_lambda_.20} parent=0 // pred_check_branch
    %151 = sbr.rel (0) target = $region21
  $region20: #{_lambda_.20} parent=0 // pred_region
    _
  $region21: #{_lambda_.20} parent=0 // pred_fallthru
    _
  // Predicated region
  $region22: #{_lambda_.20} parent=0 // pred_check
    _
  $region23: #{_lambda_.20} parent=0 // pred_check_branch
    %153 = sbr.rel (0) target = $region25
  $region24: #{_lambda_.20} parent=0 // pred_region
    _
  $region25: #{_lambda_.20} parent=0 // pred_fallthru
    _

// kernel: _lambda_.21
$region0: #{_lambda_.21}
  #allocation0 [shape = 'u32[]', space=smem, size = 0x4, offset = 0x4, fixed_abs, tag = 'smem constant byte address 0x4 - core index']
  #allocation1 [shape = 'u32[144,128]{1,0:T(1,128)}', space=vmem, size = 0x12000, scoped, tag = 'internal scratch']
  #allocation2 [shape = 'f32[32,32]{1,0:T(8,128)}', space=vmem, size = 0x4000, scoped, tag = 'scratch operand']
  %s0 = inlined_call_operand.vmem [shape: f32[32,64], index: 0, kind: input, shape index: {}]
  %s1 = inlined_call_operand.vmem [shape: f32[64,32], index: 1, kind: input, shape index: {}]
  %s2 = inlined_call_operand.vmem [shape: f32[32,32], index: 2, kind: input, shape index: {}]
  %s3 = inlined_call_operand.vmem [shape: f32[32,32], index: 3, kind: output, shape index: {}]
  %s4 = sld [smem:[#allocation0]]
  $region30: #{_lambda_.21} parent=0
    _
  %s6 = ssub.s32 1, %s4
  %s7 = scalar_select 0, %s6, %s4
  // Predicated region
  $region2: #{_lambda_.21} parent=0 // pred_check
    _
  $region3: #{_lambda_.21} parent=0 // pred_check_branch
    %9 = sbr.rel (0) target = $region5
  $region4: #{_lambda_.21} parent=0 // pred_region
    _
  $region5: #{_lambda_.21} parent=0 // pred_fallthru
    _
  // Predicated region
  $region6: #{_lambda_.21} parent=0 // pred_check
    _
  $region7: #{_lambda_.21} parent=0 // pred_check_branch
    %11 = sbr.rel (0) target = $region9
  $region8: #{_lambda_.21} parent=0 // pred_region
    _
  $region9: #{_lambda_.21} parent=0 // pred_fallthru
    _
  // Predicated region
  $region10: #{_lambda_.21} parent=0 // pred_check
    _
  $region11: #{_lambda_.21} parent=0 // pred_check_branch
    %13 = sbr.rel (0) target = $region13
  $region12: #{_lambda_.21} parent=0 // pred_region
    _
  $region13: #{_lambda_.21} parent=0 // pred_fallthru
    _
  %p14 = scmp.eq.s32.totalorder 0, 0
  // Predicated region
  $region14: #{_lambda_.21} parent=0 // pred_check
    %p15 = pneg %p14
  $region15: #{_lambda_.21} parent=0 // pred_check_branch
    %17 = sbr.rel (%p15) target = $region17
  $region16: #{_lambda_.21} parent=0 // pred_region
    %vm18 = vcmask 261120
    %19 = vst.msk [vmem:[#allocation2] sm:$0xff] %vm18, 0.0
    %20 = vst.msk [vmem:[#allocation2 + $0x8] sm:$0xff] %vm18, 0.0
    %21 = vst.msk [vmem:[#allocation2 + $0x10] sm:$0xff] %vm18, 0.0
    %22 = vst.msk [vmem:[#allocation2 + $0x18] sm:$0xff] %vm18, 0.0
  $region17: #{_lambda_.21} parent=0 // pred_fallthru
    _
  %v23 = vld [vmem:[#allocation2] sm:$0xff]
  %v24 = vld [vmem:[#allocation2 + $0x8] sm:$0xff]
  %v25 = vld [vmem:[#allocation2 + $0x10] sm:$0xff]
  %v26 = vld [vmem:[#allocation2 + $0x18] sm:$0xff]
  %v27 = vld [vmem:[%s0] sm:$0xff]
  %v28 = vld [vmem:[%s0 + $0x8] sm:$0xff]
  %v29 = vld [vmem:[%s0 + $0x10] sm:$0xff]
  %v30 = vld [vmem:[%s0 + $0x18] sm:$0xff]
  %v31 = vld [vmem:[%s1] sm:$0xff]
  %v32 = vld [vmem:[%s1 + $0x8] sm:$0xff]
  %v33 = vld [vmem:[%s1 + $0x10] sm:$0xff]
  %v34 = vld [vmem:[%s1 + $0x18] sm:$0xff]
  %v35 = vld [vmem:[%s1 + $0x20] sm:$0xff]
  %v36 = vld [vmem:[%s1 + $0x28] sm:$0xff]
  %v37 = vld [vmem:[%s1 + $0x30] sm:$0xff]
  %v38 = vld [vmem:[%s1 + $0x38] sm:$0xff]
  %vm39 = vcmask 523264
  %v41 = vsel %vm39, %v27, 0
  %v44 = vsel %vm39, %v28, 0
  %v47 = vsel %vm39, %v29, 0
  %v50 = vsel %vm39, %v30, 0
  %52 = vmatprep.subr.mxu0 0.0
  %53 = vmatpush1.msra.mxu0 %v31
  %54 = vmatprep.subr.mxu0 0.0
  %55 = vmatpush1.msra.mxu0 %v32
  %56 = vmatprep.subr.mxu0 0.0
  %57 = vmatpush1.msra.mxu0 %v33
  %58 = vmatprep.subr.mxu0 0.0
  %59 = vmatpush1.msra.mxu0 %v34
  %60 = vmatprep.subr.mxu0 0.0
  %61 = vmatpush1.msra.mxu0 %v35
  %62 = vmatprep.subr.mxu0 0.0
  %63 = vmatpush1.msra.mxu0 %v36
  %64 = vmatprep.subr.mxu0 0.0
  %65 = vmatpush1.msra.mxu0 %v37
  %66 = vmatprep.subr.mxu0 0.0
  %67 = vmatpush1.msra.mxu0 %v38
  %68 = vmatprep.subr.mxu0 0.0
  %69 = vmatpush1.msra.mxu0 0.0
  %70 = vmatprep.subr.mxu0 0.0
  %71 = vmatpush1.msra.mxu0 0.0
  %72 = vmatprep.subr.mxu0 0.0
  %73 = vmatpush1.msra.mxu0 0.0
  %74 = vmatprep.subr.mxu0 0.0
  %75 = vmatpush1.msra.mxu0 0.0
  %76 = vmatprep.subr.mxu0 0.0
  %77 = vmatpush1.msra.mxu0 0.0
  %78 = vmatprep.subr.mxu0 0.0
  %79 = vmatpush1.msra.mxu0 0.0
  %80 = vmatprep.subr.mxu0 0.0
  %81 = vmatpush1.msra.mxu0 0.0
  %82 = vmatprep.subr.mxu0 0.0
  %83 = vmatpush1.msra.mxu0 0.0
  %84 = vmatprep.subr.mxu0 0.0
  %85 = vmatpush1.msra.mxu0 0.0
  %86 = vmatprep.subr.mxu0 0.0
  %87 = vmatpush1.msra.mxu0 0.0
  %88 = vmatprep.subr.mxu0 0.0
  %89 = vmatpush1.msra.mxu0 0.0
  %90 = vmatprep.subr.mxu0 0.0
  %91 = vmatpush1.msra.mxu0 0.0
  %92 = vmatprep.subr.mxu0 0.0
  %93 = vmatpush1.msra.mxu0 0.0
  %94 = vmatprep.subr.mxu0 0.0
  %95 = vmatpush1.msra.mxu0 0.0
  %96 = vmatprep.subr.mxu0 0.0
  %97 = vmatpush1.msra.mxu0 0.0
  %98 = vmatprep.subr.mxu0 0.0
  %99 = vmatpush1.msra.mxu0 0.0
  %100 = vmatprep.subr.mxu0 0.0
  %101 = vmatpush1.msra.mxu0 0.0
  %102 = vmatprep.subr.mxu0 0.0
  %103 = vmatpush1.msra.mxu0 0.0
  %104 = vmatprep.subr.mxu0 0.0
  %105 = vmatpush1.msra.mxu0 0.0
  %106 = vmatprep.subr.mxu0 0.0
  %107 = vmatpush1.msra.mxu0 0.0
  %108 = vmatprep.subr.mxu0 0.0
  %109 = vmatpush1.msra.mxu0 0.0
  %110 = vmatprep.subr.mxu0 0.0
  %111 = vmatpush1.msra.mxu0 0.0
  %112 = vmatprep.subr.mxu0 0.0
  %113 = vmatpush1.msra.mxu0 0.0
  %114 = vmatprep.subr.mxu0 0.0
  %115 = vmatpush1.msra.mxu0 0.0
  %116 = vmatprep.mubr.f32.mxu0 0.0
  %117 = vmatmul.mubr.f32.gmra.mrb[0].mxu0 %v41
  %v118 = vpop.f32.mrb[0].mxu0
  %v119 = vadd.f32 0.0, %v118
  %v120 = vpop.f32.mrb[0].mxu0
  %121 = vmatprep.mubr.f32.mxu0 0.0
  %122 = vmatmul.mubr.f32.gmra.mrb[0].mxu0 %v44
  %v123 = vpop.f32.mrb[0].mxu0
  %v124 = vadd.f32 0.0, %v123
  %v125 = vpop.f32.mrb[0].mxu0
  %126 = vmatprep.mubr.f32.mxu0 0.0
  %127 = vmatmul.mubr.f32.gmra.mrb[0].mxu0 %v47
  %v128 = vpop.f32.mrb[0].mxu0
  %v129 = vadd.f32 0.0, %v128
  %v130 = vpop.f32.mrb[0].mxu0
  %131 = vmatprep.mubr.f32.mxu0 0.0
  %132 = vmatmul.mubr.f32.gmra.mrb[0].mxu0 %v50
  %v133 = vpop.f32.mrb[0].mxu0
  %v134 = vadd.f32 0.0, %v133
  %v135 = vpop.f32.mrb[0].mxu0
  %136 = vdwg.mxu0
  %v137 = vadd.f32 %v23, %v119
  %v138 = vadd.f32 %v24, %v124
  %v139 = vadd.f32 %v25, %v129
  %v140 = vadd.f32 %v26, %v134
  %vm141 = vcmask 261120
  %142 = vst.msk [vmem:[#allocation2] sm:$0xff] %vm141, %v137
  %143 = vst.msk [vmem:[#allocation2 + $0x8] sm:$0xff] %vm141, %v138
  %144 = vst.msk [vmem:[#allocation2 + $0x10] sm:$0xff] %vm141, %v139
  %145 = vst.msk [vmem:[#allocation2 + $0x18] sm:$0xff] %vm141, %v140
  // Predicated region
  $region18: #{_lambda_.21} parent=0 // pred_check
    %p146 = pneg %p14
  $region19: #{_lambda_.21} parent=0 // pred_check_branch
    %148 = sbr.rel (%p146) target = $region21
  $region20: #{_lambda_.21} parent=0 // pred_region
    %v149 = vld [vmem:[#allocation2] sm:$0xff]
    %v150 = vld [vmem:[#allocation2 + $0x8] sm:$0xff]
    %v151 = vld [vmem:[#allocation2 + $0x10] sm:$0xff]
    %v152 = vld [vmem:[#allocation2 + $0x18] sm:$0xff]
    %v153 = vld [vmem:[%s2] sm:$0xff]
    %v154 = vld [vmem:[%s2 + $0x8] sm:$0xff]
    %v155 = vld [vmem:[%s2 + $0x10] sm:$0xff]
    %v156 = vld [vmem:[%s2 + $0x18] sm:$0xff]
    %v157 = vadd.f32 %v149, %v153
    %v158 = vadd.f32 %v150, %v154
    %v159 = vadd.f32 %v151, %v155
    %v160 = vadd.f32 %v152, %v156
    %161 = vst.msk [vmem:[%s3] sm:$0xff] %vm141, %v157
    %162 = vst.msk [vmem:[%s3 + $0x8] sm:$0xff] %vm141, %v158
    %163 = vst.msk [vmem:[%s3 + $0x10] sm:$0xff] %vm141, %v159
    %164 = vst.msk [vmem:[%s3 + $0x18] sm:$0xff] %vm141, %v160
  $region21: #{_lambda_.21} parent=0 // pred_fallthru
    _
  // Predicated region
  $region22: #{_lambda_.21} parent=0 // pred_check
    _
  $region23: #{_lambda_.21} parent=0 // pred_check_branch
    %166 = sbr.rel (0) target = $region25
  $region24: #{_lambda_.21} parent=0 // pred_region
    _
  $region25: #{_lambda_.21} parent=0 // pred_fallthru
    _
  // Predicated region
  $region26: #{_lambda_.21} parent=0 // pred_check
    _
  $region27: #{_lambda_.21} parent=0 // pred_check_branch
    %168 = sbr.rel (0) target = $region29
  $region28: #{_lambda_.21} parent=0 // pred_region
    _
  $region29: #{_lambda_.21} parent=0 // pred_fallthru
    _

// kernel: _lambda_.29
$region0: #{_lambda_.29}
  #allocation0 [shape = 'u32[]', space=smem, size = 0x4, offset = 0x4, fixed_abs, tag = 'smem constant byte address 0x4 - core index']
  #allocation1 [shape = 'u32[144,128]{1,0:T(1,128)}', space=vmem, size = 0x12000, scoped, tag = 'internal scratch']
  %s0 = inlined_call_operand.vmem [shape: f32[32,32], index: 0, kind: input, shape index: {}]
  %s1 = inlined_call_operand.vmem [shape: f32[1,32], index: 1, kind: input, shape index: {}]
  %s2 = inlined_call_operand.hbm [shape: f32[32,32], index: 2, kind: output, shape index: {}]
  %s3 = sld [smem:[#allocation0]]
  $region18: #{_lambda_.29} parent=0
    _
  %s5 = ssub.s32 1, %s3
  %s6 = scalar_select 0, %s5, %s3
  $region1: #{_lambda_.29} parent=0
    #allocation2 [shape = 'u8[16384]{0}', space=vmem, size = 0x4000, scoped, tag = 'output window, operand 0, single buffered']
    #allocation3 [shape = 's32[1]{0}', space=sflag, size = 0x4, scoped, tag = 'scoped memory for _lambda_.29']
    %7 = vsyncpa [#allocation3], 0
    // Predicated region
    $region2: #{_lambda_.29} parent=1 // pred_check
      _
    $region3: #{_lambda_.29} parent=1 // pred_check_branch
      %9 = sbr.rel (0) target = $region5
    $region4: #{_lambda_.29} parent=1 // pred_region
      _
    $region5: #{_lambda_.29} parent=1 // pred_fallthru
      _
    // Predicated region
    $region6: #{_lambda_.29} parent=1 // pred_check
      _
    $region7: #{_lambda_.29} parent=1 // pred_check_branch
      %11 = sbr.rel (0) target = $region9
    $region8: #{_lambda_.29} parent=1 // pred_region
      _
    $region9: #{_lambda_.29} parent=1 // pred_fallthru
      _
    %v12 = vld [vmem:[%s0] sm:$0xff]
    %v13 = vld [vmem:[%s0 + $0x8] sm:$0xff]
    %v14 = vld [vmem:[%s0 + $0x10] sm:$0xff]
    %v15 = vld [vmem:[%s0 + $0x18] sm:$0xff]
    %vm16 = vcmask 261120
    %v17 = vsel %vm16, %v12, 0.0
    %18 = vadd.xlane.f32.xlu0 %v17
    %v19 = vpop.xlane.xlu0 %18
    %v20 = vsel %vm16, %v13, 0.0
    %21 = vadd.xlane.f32.xlu0 %v20
    %v22 = vpop.xlane.xlu0 %21
    %v23 = vsel %vm16, %v14, 0.0
    %24 = vadd.xlane.f32.xlu0 %v23
    %v25 = vpop.xlane.xlu0 %24
    %v26 = vsel %vm16, %v15, 0.0
    %27 = vadd.xlane.f32.xlu0 %v26
    %v28 = vpop.xlane.xlu0 %27
    %v29 = vrcp.pop 32.0
    %v30 = vmul.f32 %v19, %v29
    %v31 = vmul.f32 %v22, %v29
    %v32 = vmul.f32 %v25, %v29
    %v33 = vmul.f32 %v28, %v29
    %v34 = vsub.f32 %v12, %v30
    %v35 = vsub.f32 %v13, %v31
    %v36 = vsub.f32 %v14, %v32
    %v37 = vsub.f32 %v15, %v33
    %v38 = vmul.f32 %v34, %v34
    %v39 = vmul.f32 %v35, %v35
    %v40 = vmul.f32 %v36, %v36
    %v41 = vmul.f32 %v37, %v37
    %v42 = vsel %vm16, %v38, 0.0
    %43 = vadd.xlane.f32.xlu0 %v42
    %v44 = vpop.xlane.xlu0 %43
    %v45 = vsel %vm16, %v39, 0.0
    %46 = vadd.xlane.f32.xlu0 %v45
    %v47 = vpop.xlane.xlu0 %46
    %v48 = vsel %vm16, %v40, 0.0
    %49 = vadd.xlane.f32.xlu0 %v48
    %v50 = vpop.xlane.xlu0 %49
    %v51 = vsel %vm16, %v41, 0.0
    %52 = vadd.xlane.f32.xlu0 %v51
    %v53 = vpop.xlane.xlu0 %52
    %v54 = vmul.f32 %v44, %v29
    %v55 = vmul.f32 %v47, %v29
    %v56 = vmul.f32 %v50, %v29
    %v57 = vmul.f32 %v53, %v29
    %v58 = vadd.f32 %v54, 1e-05
    %v59 = vadd.f32 %v55, 1e-05
    %v60 = vadd.f32 %v56, 1e-05
    %v61 = vadd.f32 %v57, 1e-05
    %v62 = vrsqrt.pop %v58
    %v63 = vrsqrt.pop %v59
    %v64 = vrsqrt.pop %v60
    %v65 = vrsqrt.pop %v61
    %v66 = vmul.f32 %v34, %v62
    %v67 = vmul.f32 %v35, %v63
    %v68 = vmul.f32 %v36, %v64
    %v69 = vmul.f32 %v37, %v65
    %v70 = vld [vmem:[%s1] sm:$0x1]
    %v72 = vlaneseq
    %v73 = vshrl.u32 %v72, 7
    %v74 = vsub.s32 0, %v73
    %v75 = vrot.slane %v70, %v74
    %v77 = vmul.f32 %v66, %v75
    %v78 = vmul.f32 %v67, %v75
    %v79 = vmul.f32 %v68, %v75
    %v80 = vmul.f32 %v69, %v75
    %81 = vst.msk [vmem:[#allocation2] sm:$0xff] %vm16, %v77
    %82 = vst.msk [vmem:[#allocation2 + $0x8] sm:$0xff] %vm16, %v78
    %83 = vst.msk [vmem:[#allocation2 + $0x10] sm:$0xff] %vm16, %v79
    %84 = vst.msk [vmem:[#allocation2 + $0x18] sm:$0xff] %vm16, %v80
    // Predicated region
    $region10: #{_lambda_.29} parent=1 // pred_check
      _
    $region11: #{_lambda_.29} parent=1 // pred_check_branch
      %86 = sbr.rel (0) target = $region13
    $region12: #{_lambda_.29} parent=1 // pred_region
      %s88 = ssub.s32 512, 512
      %89 = vsyncadd [#allocation3], %s88
      %s90 = sshll.u32 [#allocation2], 4
      %s91 = int_to_ptr.vmem [resolvable:$true] %s90
      %96 = dma.vmem_to_hbm [thread:$0]  %s91, 512, %s2, [#allocation3], 128, 128, 8
    $region13: #{_lambda_.29} parent=1 // pred_fallthru
      _
    // Predicated region
    $region14: #{_lambda_.29} parent=1 // pred_check
      _
    $region15: #{_lambda_.29} parent=1 // pred_check_branch
      %98 = sbr.rel (0) target = $region17
    $region16: #{_lambda_.29} parent=1 // pred_region
      %99 = dma.done [#allocation3], 512
    $region17: #{_lambda_.29} parent=1 // pred_fallthru
      _
    %100 = vsyncpa [#allocation3], 1

</llo_original>
